<compile_context>
chip_gen: v6e
topology: v6e:2x2x1
jax: 0.10.0
libtpu: 0.0.40
codegen_flags: <defaults>
</compile_context>

<pallas_src>
import jax
import jax.numpy as jnp
from jax.experimental import pallas as pl
from jax.experimental.pallas import tpu as pltpu


def _round_up(x, m):
    return ((x + m - 1) // m) * m


def mynet_kernel(x_ref, w1_ref, b1_ref, w2_ref, b2_ref, w3_ref, b3_ref, o_ref):
    # x tile (TM, 896) bf16; weights bf16 (VMEM-resident); biases f32;
    # MXU accumulation in f32; softmax in f32 over the padded 128-class row
    # (padded columns carry a -1e30 bias -> exp()==0 -> exact softmax).
    x = x_ref[...]

    # fc1 + relu
    h1 = jnp.dot(x, w1_ref[...], preferred_element_type=jnp.float32)
    h1 = jnp.maximum(h1 + b1_ref[...], 0.0)

    # fc2 + relu
    h2 = jnp.dot(h1.astype(w2_ref.dtype), w2_ref[...],
                 preferred_element_type=jnp.float32)
    h2 = jnp.maximum(h2 + b2_ref[...], 0.0)

    # fc3 + softmax(dim=-1)
    logits = jnp.dot(h2.astype(w3_ref.dtype), w3_ref[...],
                     preferred_element_type=jnp.float32)
    logits = logits + b3_ref[...]          # padded classes -> -1e30

    m = jnp.max(logits, axis=-1, keepdims=True)
    e = jnp.exp(logits - m)                # padded classes underflow to 0
    s = jnp.sum(e, axis=-1, keepdims=True)
    o_ref[...] = (e * pl.reciprocal(s, approx=True)).astype(o_ref.dtype)


def make_params(input_shape=(1, 28, 28), classes=10):
    """Deterministic init matching the PyTorch module (weights=0.01, biases=0),
    zero-padded to lane-aligned shapes; weights cast to bf16.  Padded logit
    columns get a -1e30 bias so they vanish under softmax."""
    d_in = input_shape[1] * input_shape[2]   # 784
    d1, d2 = 300, 64

    d_in_p = _round_up(d_in, 128)            # 896
    d1_p = _round_up(d1, 128)                # 384
    d2_p = _round_up(d2, 128)                # 128
    c_p = _round_up(classes, 128)            # 128 (lane-dense output)

    def pad2(a, rows, cols, fill=0.0):
        out = jnp.full((rows, cols), fill, a.dtype)
        return out.at[:a.shape[0], :a.shape[1]].set(a)

    w1 = jnp.full((d_in, d1), 0.01, dtype=jnp.float32)
    b1 = jnp.zeros((1, d1), dtype=jnp.float32)
    w2 = jnp.full((d1, d2), 0.01, dtype=jnp.float32)
    b2 = jnp.zeros((1, d2), dtype=jnp.float32)
    w3 = jnp.full((d2, classes), 0.01, dtype=jnp.float32)
    b3 = jnp.zeros((1, classes), dtype=jnp.float32)

    # Zero padding of contraction dims is exact (ReLU(0)=0, zero rows of the
    # next weight kill padded columns).  Classes dim padded but neutralized
    # with a -1e30 bias on the padded columns.
    w1_p = pad2(w1, d_in_p, d1_p).astype(jnp.bfloat16)
    b1_p = pad2(b1, 1, d1_p)
    w2_p = pad2(w2, d1_p, d2_p).astype(jnp.bfloat16)
    b2_p = pad2(b2, 1, d2_p)
    w3_p = pad2(w3, d2_p, c_p).astype(jnp.bfloat16)
    b3_p = pad2(b3, 1, c_p, fill=-1e30)
    return (w1_p, b1_p, w2_p, b2_p, w3_p, b3_p)


def mynet_forward(x_nchw, params, *, classes=10, tm_max=256):
    """x_nchw: (B, C, H, W) float32. Returns softmax probs (B, classes) f32."""
    w1, b1, w2, b2, w3, b3 = params
    B = x_nchw.shape[0]
    x_flat = x_nchw.reshape(B, -1)           # same as torch x.view(B, -1)

    d_in_p = w1.shape[0]                     # 896
    c_p = w3.shape[1]                        # 128

    # Adaptive batch tile: multiple of 16 (bf16 sublane packing), capped at
    # tm_max.  Small batches stay small; large batches get 256-row tiles.
    tm = min(tm_max, _round_up(max(B, 1), 16))
    b_pad = _round_up(max(B, 1), tm)

    # Pad batch + features; cast x to bf16 (the dominant HBM stream).
    x_p = jnp.zeros((b_pad, d_in_p), dtype=jnp.bfloat16)
    x_p = x_p.at[:B, :x_flat.shape[1]].set(x_flat.astype(jnp.bfloat16))

    grid = (b_pad // tm,)
    resident = lambda i: (0, 0)              # weights/biases: DMA once, stay in VMEM

    out = pl.pallas_call(
        mynet_kernel,
        out_shape=jax.ShapeDtypeStruct((b_pad, c_p), jnp.float32),
        grid=grid,
        in_specs=[
            pl.BlockSpec((tm, d_in_p), lambda i: (i, 0)),   # x: batch-tiled
            pl.BlockSpec(w1.shape, resident),
            pl.BlockSpec(b1.shape, resident),
            pl.BlockSpec(w2.shape, resident),
            pl.BlockSpec(b2.shape, resident),
            pl.BlockSpec(w3.shape, resident),
            pl.BlockSpec(b3.shape, resident),
        ],
        out_specs=pl.BlockSpec((tm, c_p), lambda i: (i, 0)),  # lane-dense store
        compiler_params=pltpu.CompilerParams(
            dimension_semantics=("parallel",)),
    )(x_p, w1, b1, w2, b2, w3, b3)

    return out[:B, :classes]


def mynet_reference(x_nchw, input_shape=(1, 28, 28), classes=10):
    """Pure-JAX f32 reference matching the torch module."""
    d_in = input_shape[1] * input_shape[2]
    B = x_nchw.shape[0]
    x = x_nchw.reshape(B, -1).astype(jnp.float32)
    w1 = jnp.full((d_in, 300), 0.01, jnp.float32)
    w2 = jnp.full((300, 64), 0.01, jnp.float32)
    w3 = jnp.full((64, classes), 0.01, jnp.float32)
    h1 = jnp.maximum(x @ w1, 0.0)
    h2 = jnp.maximum(h1 @ w2, 0.0)
    return jax.nn.softmax(h2 @ w3, axis=-1)


if __name__ == "__main__":
    B = 2
    input_shape = (1, 28, 28)   # (C, H, W) as in the torch module's default
    classes = 10

    key = jax.random.PRNGKey(0)
    x = jax.random.normal(key, (B,) + input_shape, dtype=jnp.float32)

    params = make_params(input_shape, classes)
    out = mynet_forward(x, params, classes=classes)
    out = jax.block_until_ready(out)

    # Sanity: shape, softmax rows sum to ~1, matches f32 reference within
    # bf16 / approx-reciprocal tolerance.
    assert out.shape == (B, classes)
    assert bool(jnp.allclose(jnp.sum(out, axis=-1), 1.0, atol=1e-2))
    ref = mynet_reference(x, input_shape, classes)
    assert bool(jnp.allclose(out, ref, atol=2e-2, rtol=2e-2))

    print("KERNEL_OK")
</pallas_src>

<mosaic_0001>
module attributes {stable_mosaic.version = 11 : i64} {
  func.func @mynet_kernel(%arg0: i32, %arg1: memref<16x896xbf16, #tpu.memory_space<vmem>>, %arg2: memref<896x384xbf16, #tpu.memory_space<vmem>>, %arg3: memref<1x384xf32, #tpu.memory_space<vmem>>, %arg4: memref<384x128xbf16, #tpu.memory_space<vmem>>, %arg5: memref<1x128xf32, #tpu.memory_space<vmem>>, %arg6: memref<128x128xbf16, #tpu.memory_space<vmem>>, %arg7: memref<1x128xf32, #tpu.memory_space<vmem>>, %arg8: memref<16x128xf32, #tpu.memory_space<vmem>>) attributes {dimension_semantics = [#tpu.dimension_semantics<parallel>], iteration_bounds = array<i64: 1>, scalar_prefetch = 0 : i64, scratch_operands = 0 : i64, tpu.core_type = #tpu.core_type<tc>, window_params = [{transform_indices = @transform_0, window_bounds = array<i64: 16, 896>}, {pipeline_mode = #tpu.pipeline_mode<synchronous>, transform_indices = @transform_1, window_bounds = array<i64: 896, 384>}, {pipeline_mode = #tpu.pipeline_mode<synchronous>, transform_indices = @transform_2, window_bounds = array<i64: 1, 384>}, {pipeline_mode = #tpu.pipeline_mode<synchronous>, transform_indices = @transform_3, window_bounds = array<i64: 384, 128>}, {pipeline_mode = #tpu.pipeline_mode<synchronous>, transform_indices = @transform_4, window_bounds = array<i64: 1, 128>}, {pipeline_mode = #tpu.pipeline_mode<synchronous>, transform_indices = @transform_5, window_bounds = array<i64: 128, 128>}, {pipeline_mode = #tpu.pipeline_mode<synchronous>, transform_indices = @transform_6, window_bounds = array<i64: 1, 128>}, {transform_indices = @transform_7, window_bounds = array<i64: 16, 128>}]} {
    %c0 = arith.constant 0 : index
    %c0_0 = arith.constant 0 : index
    %0 = vector.load %arg1[%c0, %c0_0] : memref<16x896xbf16, #tpu.memory_space<vmem>>, vector<16x896xbf16>
    %c0_1 = arith.constant 0 : index
    %c0_2 = arith.constant 0 : index
    %1 = vector.load %arg2[%c0_1, %c0_2] : memref<896x384xbf16, #tpu.memory_space<vmem>>, vector<896x384xbf16>
    %cst = arith.constant dense<0.000000e+00> : vector<16x384xf32>
    %2 = tpu.matmul %0, %1, %cst {dimension_numbers = #tpu.dot_dimension_numbers<[1], [0], [0], [1], [0, 0, 1, 1], [], []>} : vector<16x896xbf16>, vector<896x384xbf16>, vector<16x384xf32> -> vector<16x384xf32>
    %c0_3 = arith.constant 0 : index
    %c0_4 = arith.constant 0 : index
    %3 = vector.load %arg3[%c0_3, %c0_4] : memref<1x384xf32, #tpu.memory_space<vmem>>, vector<1x384xf32>
    %4 = vector.broadcast %3 : vector<1x384xf32> to vector<16x384xf32>
    %5 = arith.addf %2, %4 : vector<16x384xf32>
    %cst_5 = arith.constant 0.000000e+00 : f32
    %6 = vector.broadcast %cst_5 : f32 to vector<16x384xf32>
    %7 = arith.maximumf %5, %6 : vector<16x384xf32>
    %8 = arith.truncf %7 : vector<16x384xf32> to vector<16x384xbf16>
    %c0_6 = arith.constant 0 : index
    %c0_7 = arith.constant 0 : index
    %9 = vector.load %arg4[%c0_6, %c0_7] : memref<384x128xbf16, #tpu.memory_space<vmem>>, vector<384x128xbf16>
    %cst_8 = arith.constant dense<0.000000e+00> : vector<16x128xf32>
    %10 = tpu.matmul %8, %9, %cst_8 {dimension_numbers = #tpu.dot_dimension_numbers<[1], [0], [0], [1], [0, 0, 1, 1], [], []>} : vector<16x384xbf16>, vector<384x128xbf16>, vector<16x128xf32> -> vector<16x128xf32>
    %c0_9 = arith.constant 0 : index
    %c0_10 = arith.constant 0 : index
    %11 = vector.load %arg5[%c0_9, %c0_10] : memref<1x128xf32, #tpu.memory_space<vmem>>, vector<1x128xf32>
    %12 = vector.broadcast %11 : vector<1x128xf32> to vector<16x128xf32>
    %13 = arith.addf %10, %12 : vector<16x128xf32>
    %cst_11 = arith.constant 0.000000e+00 : f32
    %14 = vector.broadcast %cst_11 : f32 to vector<16x128xf32>
    %15 = arith.maximumf %13, %14 : vector<16x128xf32>
    %16 = arith.truncf %15 : vector<16x128xf32> to vector<16x128xbf16>
    %c0_12 = arith.constant 0 : index
    %c0_13 = arith.constant 0 : index
    %17 = vector.load %arg6[%c0_12, %c0_13] : memref<128x128xbf16, #tpu.memory_space<vmem>>, vector<128x128xbf16>
    %cst_14 = arith.constant dense<0.000000e+00> : vector<16x128xf32>
    %18 = tpu.matmul %16, %17, %cst_14 {dimension_numbers = #tpu.dot_dimension_numbers<[1], [0], [0], [1], [0, 0, 1, 1], [], []>} : vector<16x128xbf16>, vector<128x128xbf16>, vector<16x128xf32> -> vector<16x128xf32>
    %c0_15 = arith.constant 0 : index
    %c0_16 = arith.constant 0 : index
    %19 = vector.load %arg7[%c0_15, %c0_16] : memref<1x128xf32, #tpu.memory_space<vmem>>, vector<1x128xf32>
    %20 = vector.broadcast %19 : vector<1x128xf32> to vector<16x128xf32>
    %21 = arith.addf %18, %20 : vector<16x128xf32>
    %cst_17 = arith.constant dense<0xFF800000> : vector<16xf32>
    %22 = vector.multi_reduction <maximumf>, %21, %cst_17 [1] : vector<16x128xf32> to vector<16xf32>
    %23 = vector.shape_cast %22 : vector<16xf32> to vector<16x1xf32>
    %24 = vector.broadcast %23 : vector<16x1xf32> to vector<16x128xf32>
    %25 = arith.subf %21, %24 : vector<16x128xf32>
    %26 = math.exp %25 : vector<16x128xf32>
    %cst_18 = arith.constant dense<0.000000e+00> : vector<16xf32>
    %27 = vector.multi_reduction <add>, %26, %cst_18 [1] : vector<16x128xf32> to vector<16xf32>
    %28 = vector.shape_cast %27 : vector<16xf32> to vector<16x1xf32>
    %29 = tpu.reciprocal %28 {approx = true} : vector<16x1xf32> -> vector<16x1xf32>
    %30 = vector.broadcast %29 : vector<16x1xf32> to vector<16x128xf32>
    %31 = arith.mulf %26, %30 : vector<16x128xf32>
    %c0_19 = arith.constant 0 : index
    %c0_20 = arith.constant 0 : index
    %32 = vector.load %arg8[%c0_19, %c0_20] : memref<16x128xf32, #tpu.memory_space<vmem>>, vector<16x128xf32>
    tpu.vector_store %arg8[%c0_19, %c0_20], %31 {strides = array<i32>} : memref<16x128xf32, #tpu.memory_space<vmem>>, vector<16x128xf32>,
    return
  }
  func.func @transform_0(%arg0: i32) -> (i32, i32) {
    %c0_i32 = arith.constant 0 : i32
    %c0_i32_0 = arith.constant 0 : i32
    return %arg0, %c0_i32 : i32, i32
  }
  func.func @transform_1(%arg0: i32) -> (i32, i32) {
    %c0_i32 = arith.constant 0 : i32
    %c0_i32_0 = arith.constant 0 : i32
    %c0_i32_1 = arith.constant 0 : i32
    return %c0_i32, %c0_i32_0 : i32, i32
  }
  func.func @transform_2(%arg0: i32) -> (i32, i32) {
    %c0_i32 = arith.constant 0 : i32
    %c0_i32_0 = arith.constant 0 : i32
    %c0_i32_1 = arith.constant 0 : i32
    return %c0_i32, %c0_i32_0 : i32, i32
  }
  func.func @transform_3(%arg0: i32) -> (i32, i32) {
    %c0_i32 = arith.constant 0 : i32
    %c0_i32_0 = arith.constant 0 : i32
    %c0_i32_1 = arith.constant 0 : i32
    return %c0_i32, %c0_i32_0 : i32, i32
  }
  func.func @transform_4(%arg0: i32) -> (i32, i32) {
    %c0_i32 = arith.constant 0 : i32
    %c0_i32_0 = arith.constant 0 : i32
    %c0_i32_1 = arith.constant 0 : i32
    return %c0_i32, %c0_i32_0 : i32, i32
  }
  func.func @transform_5(%arg0: i32) -> (i32, i32) {
    %c0_i32 = arith.constant 0 : i32
    %c0_i32_0 = arith.constant 0 : i32
    %c0_i32_1 = arith.constant 0 : i32
    return %c0_i32, %c0_i32_0 : i32, i32
  }
  func.func @transform_6(%arg0: i32) -> (i32, i32) {
    %c0_i32 = arith.constant 0 : i32
    %c0_i32_0 = arith.constant 0 : i32
    %c0_i32_1 = arith.constant 0 : i32
    return %c0_i32, %c0_i32_0 : i32, i32
  }
  func.func @transform_7(%arg0: i32) -> (i32, i32) {
    %c0_i32 = arith.constant 0 : i32
    %c0_i32_0 = arith.constant 0 : i32
    return %arg0, %c0_i32 : i32, i32
  }
}

</mosaic_0001>

<llo_original>
// kernel: tpu_custom_call.1
$region0: #{tpu_custom_call.1}
  #allocation0 [shape = 'u32[]', space=smem, size = 0x4, offset = 0x4, fixed_abs, tag = 'smem constant byte address 0x4 - core index']
  #allocation1 [shape = 'u32[144,128]{1,0:T(1,128)}', space=vmem, size = 0x12000, scoped, tag = 'internal scratch']
  %s0 = inlined_call_operand.hbm [shape: bf16[16,896], index: 0, kind: input, shape index: {}]
  %s1 = inlined_call_operand.hbm [shape: bf16[896,384], index: 1, kind: input, shape index: {}]
  %s2 = inlined_call_operand.vmem [shape: f32[1,384], index: 2, kind: input, shape index: {}]
  %s3 = inlined_call_operand.hbm [shape: bf16[384,128], index: 3, kind: input, shape index: {}]
  %s4 = inlined_call_operand.vmem [shape: f32[1,128], index: 4, kind: input, shape index: {}]
  %s5 = inlined_call_operand.hbm [shape: bf16[128,128], index: 5, kind: input, shape index: {}]
  %s6 = inlined_call_operand.vmem [shape: f32[1,128], index: 6, kind: input, shape index: {}]
  %s7 = inlined_call_operand.hbm [shape: f32[16,128], index: 7, kind: output, shape index: {}]
  %s8 = sld [smem:[#allocation0]]
  $region54: #{tpu_custom_call.1} parent=0
    _
  %s10 = ssub.s32 1, %s8
  %s11 = scalar_select 0, %s10, %s8
  $region1: #{tpu_custom_call.1} parent=0
    #allocation2 [shape = 'u8[28672]{0}', space=vmem, size = 0x7000, scoped, tag = 'input window, operand 0, single buffered']
    #allocation3 [shape = 's32[1]{0}', space=sflag, size = 0x4, scoped, tag = 'scoped memory for tpu_custom_call.1']
    #allocation4 [shape = 's32[1]{0}', space=sflag, size = 0x4, scoped, tag = 'scoped memory for tpu_custom_call.1']
    #allocation5 [shape = 'u8[688128]{0}', space=vmem, size = 0xa8000, scoped, tag = 'input window, operand 1, single buffered']
    #allocation6 [shape = 's32[1]{0}', space=sflag, size = 0x4, scoped, tag = 'scoped memory for tpu_custom_call.1']
    #allocation7 [shape = 'u8[98304]{0}', space=vmem, size = 0x18000, scoped, tag = 'input window, operand 3, single buffered']
    #allocation8 [shape = 'u8[32768]{0}', space=vmem, size = 0x8000, scoped, tag = 'input window, operand 5, single buffered']
    #allocation9 [shape = 's32[1]{0}', space=sflag, size = 0x4, scoped, tag = 'scoped memory for tpu_custom_call.1']
    #allocation10 [shape = 'u8[8192]{0}', space=vmem, size = 0x2000, scoped, tag = 'output window, operand 0, single buffered']
    %12 = vsyncpa [#allocation3], 0
    %13 = vsyncpa [#allocation6], 0
    %14 = vsyncpa [#allocation9], 0
    %15 = vsyncpa [#allocation4], 0
    // Predicated region
    $region2: #{tpu_custom_call.1} parent=1 // pred_check
      _
    $region3: #{tpu_custom_call.1} parent=1 // pred_check_branch
      %17 = sbr.rel (0) target = $region5
    $region4: #{tpu_custom_call.1} parent=1 // pred_region
      %s19 = ssub.s32 896, 896
      %20 = vsyncadd [#allocation3], %s19
      %s21 = sshll.u32 [#allocation2], 4
      %s22 = int_to_ptr.vmem [resolvable:$true] %s21
      %27 = dma.hbm_to_vmem [thread:$0]  %s0, 896, %s22, [#allocation3], 448, 448, 28
    $region5: #{tpu_custom_call.1} parent=1 // pred_fallthru
      _
    // Predicated region
    $region6: #{tpu_custom_call.1} parent=1 // pred_check
      _
    $region7: #{tpu_custom_call.1} parent=1 // pred_check_branch
      %29 = sbr.rel (0) target = $region9
    $region8: #{tpu_custom_call.1} parent=1 // pred_region
      %s31 = ssub.s32 21504, 21504
      %32 = vsyncadd [#allocation6], %s31
      %s33 = sshll.u32 [#allocation5], 4
      %s34 = int_to_ptr.vmem [resolvable:$true] %s33
      %39 = dma.hbm_to_vmem [thread:$0]  %s1, 21504, %s34, [#allocation6], 192, 192, 12
    $region9: #{tpu_custom_call.1} parent=1 // pred_fallthru
      _
    // Predicated region
    $region10: #{tpu_custom_call.1} parent=1 // pred_check
      _
    $region11: #{tpu_custom_call.1} parent=1 // pred_check_branch
      %41 = sbr.rel (0) target = $region13
    $region12: #{tpu_custom_call.1} parent=1 // pred_region
      _
    $region13: #{tpu_custom_call.1} parent=1 // pred_fallthru
      _
    // Predicated region
    $region14: #{tpu_custom_call.1} parent=1 // pred_check
      _
    $region15: #{tpu_custom_call.1} parent=1 // pred_check_branch
      %43 = sbr.rel (0) target = $region17
    $region16: #{tpu_custom_call.1} parent=1 // pred_region
      %s45 = ssub.s32 3072, 3072
      %46 = vsyncadd [#allocation6], %s45
      %s47 = sshll.u32 [#allocation7], 4
      %s48 = int_to_ptr.vmem [resolvable:$true] %s47
      %53 = dma.hbm_to_vmem [thread:$0]  %s3, 3072, %s48, [#allocation6], 64, 64, 4
    $region17: #{tpu_custom_call.1} parent=1 // pred_fallthru
      _
    // Predicated region
    $region18: #{tpu_custom_call.1} parent=1 // pred_check
      _
    $region19: #{tpu_custom_call.1} parent=1 // pred_check_branch
      %55 = sbr.rel (0) target = $region21
    $region20: #{tpu_custom_call.1} parent=1 // pred_region
      _
    $region21: #{tpu_custom_call.1} parent=1 // pred_fallthru
      _
    // Predicated region
    $region22: #{tpu_custom_call.1} parent=1 // pred_check
      _
    $region23: #{tpu_custom_call.1} parent=1 // pred_check_branch
      %57 = sbr.rel (0) target = $region25
    $region24: #{tpu_custom_call.1} parent=1 // pred_region
      %s59 = ssub.s32 1024, 1024
      %60 = vsyncadd [#allocation9], %s59
      %s61 = sshll.u32 [#allocation8], 4
      %s62 = int_to_ptr.vmem [resolvable:$true] %s61
      %67 = dma.hbm_to_vmem [thread:$0]  %s5, 1024, %s62, [#allocation9], 64, 64, 4
    $region25: #{tpu_custom_call.1} parent=1 // pred_fallthru
      _
    // Predicated region
    $region26: #{tpu_custom_call.1} parent=1 // pred_check
      _
    $region27: #{tpu_custom_call.1} parent=1 // pred_check_branch
      %69 = sbr.rel (0) target = $region29
    $region28: #{tpu_custom_call.1} parent=1 // pred_region
      _
    $region29: #{tpu_custom_call.1} parent=1 // pred_fallthru
      _
    // Predicated region
    $region30: #{tpu_custom_call.1} parent=1 // pred_check
      _
    $region31: #{tpu_custom_call.1} parent=1 // pred_check_branch
      %71 = sbr.rel (0) target = $region33
    $region32: #{tpu_custom_call.1} parent=1 // pred_region
      %72 = dma.done [#allocation3], 896
    $region33: #{tpu_custom_call.1} parent=1 // pred_fallthru
      _
    // Predicated region
    $region34: #{tpu_custom_call.1} parent=1 // pred_check
      _
    $region35: #{tpu_custom_call.1} parent=1 // pred_check_branch
      %74 = sbr.rel (0) target = $region37
    $region36: #{tpu_custom_call.1} parent=1 // pred_region
      %75 = dma.done [#allocation6], 21504
    $region37: #{tpu_custom_call.1} parent=1 // pred_fallthru
      _
    // Predicated region
    $region38: #{tpu_custom_call.1} parent=1 // pred_check
      _
    $region39: #{tpu_custom_call.1} parent=1 // pred_check_branch
      %77 = sbr.rel (0) target = $region41
    $region40: #{tpu_custom_call.1} parent=1 // pred_region
      %78 = dma.done [#allocation6], 3072
    $region41: #{tpu_custom_call.1} parent=1 // pred_fallthru
      _
    // Predicated region
    $region42: #{tpu_custom_call.1} parent=1 // pred_check
      _
    $region43: #{tpu_custom_call.1} parent=1 // pred_check_branch
      %80 = sbr.rel (0) target = $region45
    $region44: #{tpu_custom_call.1} parent=1 // pred_region
      %81 = dma.done [#allocation9], 1024
    $region45: #{tpu_custom_call.1} parent=1 // pred_fallthru
      _
    %v83 = vld [vmem:[#allocation2] sm:$0xff]
    %v84 = vld [vmem:[#allocation2 + $0x8] sm:$0xff]
    %v85 = vld [vmem:[#allocation2 + $0x10] sm:$0xff]
    %v86 = vld [vmem:[#allocation2 + $0x18] sm:$0xf]
    %v87 = vld [vmem:[#allocation2 + $0x1c] sm:$0xff]
    %v88 = vld [vmem:[#allocation2 + $0x24] sm:$0xff]
    %v89 = vld [vmem:[#allocation2 + $0x2c] sm:$0xff]
    %v90 = vld [vmem:[#allocation2 + $0x34] sm:$0xf]
    %v91 = vld [vmem:[#allocation5] sm:$0xff]
    %v92 = vld [vmem:[#allocation5 + $0x8] sm:$0xf]
    %v93 = vld [vmem:[#allocation5 + $0xc] sm:$0xff]
    %v94 = vld [vmem:[#allocation5 + $0x14] sm:$0xf]
    %v95 = vld [vmem:[#allocation5 + $0x18] sm:$0xff]
    %v96 = vld [vmem:[#allocation5 + $0x20] sm:$0xf]
    %v97 = vld [vmem:[#allocation5 + $0x24] sm:$0xff]
    %v98 = vld [vmem:[#allocation5 + $0x2c] sm:$0xf]
    %v99 = vld [vmem:[#allocation5 + $0x30] sm:$0xff]
    %v100 = vld [vmem:[#allocation5 + $0x38] sm:$0xf]
    %v101 = vld [vmem:[#allocation5 + $0x3c] sm:$0xff]
    %v102 = vld [vmem:[#allocation5 + $0x44] sm:$0xf]
    %v103 = vld [vmem:[#allocation5 + $0x48] sm:$0xff]
    %v104 = vld [vmem:[#allocation5 + $0x50] sm:$0xf]
    %v105 = vld [vmem:[#allocation5 + $0x54] sm:$0xff]
    %v106 = vld [vmem:[#allocation5 + $0x5c] sm:$0xf]
    %v107 = vld [vmem:[#allocation5 + $0x60] sm:$0xff]
    %v108 = vld [vmem:[#allocation5 + $0x68] sm:$0xf]
    %v109 = vld [vmem:[#allocation5 + $0x6c] sm:$0xff]
    %v110 = vld [vmem:[#allocation5 + $0x74] sm:$0xf]
    %v111 = vld [vmem:[#allocation5 + $0x78] sm:$0xff]
    %v112 = vld [vmem:[#allocation5 + $0x80] sm:$0xf]
    %v113 = vld [vmem:[#allocation5 + $0x84] sm:$0xff]
    %v114 = vld [vmem:[#allocation5 + $0x8c] sm:$0xf]
    %v115 = vld [vmem:[#allocation5 + $0x90] sm:$0xff]
    %v116 = vld [vmem:[#allocation5 + $0x98] sm:$0xf]
    %v117 = vld [vmem:[#allocation5 + $0x9c] sm:$0xff]
    %v118 = vld [vmem:[#allocation5 + $0xa4] sm:$0xf]
    %v119 = vld [vmem:[#allocation5 + $0xa8] sm:$0xff]
    %v120 = vld [vmem:[#allocation5 + $0xb0] sm:$0xf]
    %v121 = vld [vmem:[#allocation5 + $0xb4] sm:$0xff]
    %v122 = vld [vmem:[#allocation5 + $0xbc] sm:$0xf]
    %v123 = vld [vmem:[#allocation5 + $0xc0] sm:$0xff]
    %v124 = vld [vmem:[#allocation5 + $0xc8] sm:$0xf]
    %v125 = vld [vmem:[#allocation5 + $0xcc] sm:$0xff]
    %v126 = vld [vmem:[#allocation5 + $0xd4] sm:$0xf]
    %v127 = vld [vmem:[#allocation5 + $0xd8] sm:$0xff]
    %v128 = vld [vmem:[#allocation5 + $0xe0] sm:$0xf]
    %v129 = vld [vmem:[#allocation5 + $0xe4] sm:$0xff]
    %v130 = vld [vmem:[#allocation5 + $0xec] sm:$0xf]
    %v131 = vld [vmem:[#allocation5 + $0xf0] sm:$0xff]
    %v132 = vld [vmem:[#allocation5 + $0xf8] sm:$0xf]
    %v133 = vld [vmem:[#allocation5 + $0xfc] sm:$0xff]
    %v134 = vld [vmem:[#allocation5 + $0x104] sm:$0xf]
    %v135 = vld [vmem:[#allocation5 + $0x108] sm:$0xff]
    %v136 = vld [vmem:[#allocation5 + $0x110] sm:$0xf]
    %v137 = vld [vmem:[#allocation5 + $0x114] sm:$0xff]
    %v138 = vld [vmem:[#allocation5 + $0x11c] sm:$0xf]
    %v139 = vld [vmem:[#allocation5 + $0x120] sm:$0xff]
    %v140 = vld [vmem:[#allocation5 + $0x128] sm:$0xf]
    %v141 = vld [vmem:[#allocation5 + $0x12c] sm:$0xff]
    %v142 = vld [vmem:[#allocation5 + $0x134] sm:$0xf]
    %v143 = vld [vmem:[#allocation5 + $0x138] sm:$0xff]
    %v144 = vld [vmem:[#allocation5 + $0x140] sm:$0xf]
    %v145 = vld [vmem:[#allocation5 + $0x144] sm:$0xff]
    %v146 = vld [vmem:[#allocation5 + $0x14c] sm:$0xf]
    %v147 = vld [vmem:[#allocation5 + $0x150] sm:$0xff]
    %v148 = vld [vmem:[#allocation5 + $0x158] sm:$0xf]
    %v149 = vld [vmem:[#allocation5 + $0x15c] sm:$0xff]
    %v150 = vld [vmem:[#allocation5 + $0x164] sm:$0xf]
    %v151 = vld [vmem:[#allocation5 + $0x168] sm:$0xff]
    %v152 = vld [vmem:[#allocation5 + $0x170] sm:$0xf]
    %v153 = vld [vmem:[#allocation5 + $0x174] sm:$0xff]
    %v154 = vld [vmem:[#allocation5 + $0x17c] sm:$0xf]
    %v155 = vld [vmem:[#allocation5 + $0x180] sm:$0xff]
    %v156 = vld [vmem:[#allocation5 + $0x188] sm:$0xf]
    %v157 = vld [vmem:[#allocation5 + $0x18c] sm:$0xff]
    %v158 = vld [vmem:[#allocation5 + $0x194] sm:$0xf]
    %v159 = vld [vmem:[#allocation5 + $0x198] sm:$0xff]
    %v160 = vld [vmem:[#allocation5 + $0x1a0] sm:$0xf]
    %v161 = vld [vmem:[#allocation5 + $0x1a4] sm:$0xff]
    %v162 = vld [vmem:[#allocation5 + $0x1ac] sm:$0xf]
    %v163 = vld [vmem:[#allocation5 + $0x1b0] sm:$0xff]
    %v164 = vld [vmem:[#allocation5 + $0x1b8] sm:$0xf]
    %v165 = vld [vmem:[#allocation5 + $0x1bc] sm:$0xff]
    %v166 = vld [vmem:[#allocation5 + $0x1c4] sm:$0xf]
    %v167 = vld [vmem:[#allocation5 + $0x1c8] sm:$0xff]
    %v168 = vld [vmem:[#allocation5 + $0x1d0] sm:$0xf]
    %v169 = vld [vmem:[#allocation5 + $0x1d4] sm:$0xff]
    %v170 = vld [vmem:[#allocation5 + $0x1dc] sm:$0xf]
    %v171 = vld [vmem:[#allocation5 + $0x1e0] sm:$0xff]
    %v172 = vld [vmem:[#allocation5 + $0x1e8] sm:$0xf]
    %v173 = vld [vmem:[#allocation5 + $0x1ec] sm:$0xff]
    %v174 = vld [vmem:[#allocation5 + $0x1f4] sm:$0xf]
    %v175 = vld [vmem:[#allocation5 + $0x1f8] sm:$0xff]
    %v176 = vld [vmem:[#allocation5 + $0x200] sm:$0xf]
    %v177 = vld [vmem:[#allocation5 + $0x204] sm:$0xff]
    %v178 = vld [vmem:[#allocation5 + $0x20c] sm:$0xf]
    %v179 = vld [vmem:[#allocation5 + $0x210] sm:$0xff]
    %v180 = vld [vmem:[#allocation5 + $0x218] sm:$0xf]
    %v181 = vld [vmem:[#allocation5 + $0x21c] sm:$0xff]
    %v182 = vld [vmem:[#allocation5 + $0x224] sm:$0xf]
    %v183 = vld [vmem:[#allocation5 + $0x228] sm:$0xff]
    %v184 = vld [vmem:[#allocation5 + $0x230] sm:$0xf]
    %v185 = vld [vmem:[#allocation5 + $0x234] sm:$0xff]
    %v186 = vld [vmem:[#allocation5 + $0x23c] sm:$0xf]
    %v187 = vld [vmem:[#allocation5 + $0x240] sm:$0xff]
    %v188 = vld [vmem:[#allocation5 + $0x248] sm:$0xf]
    %v189 = vld [vmem:[#allocation5 + $0x24c] sm:$0xff]
    %v190 = vld [vmem:[#allocation5 + $0x254] sm:$0xf]
    %v191 = vld [vmem:[#allocation5 + $0x258] sm:$0xff]
    %v192 = vld [vmem:[#allocation5 + $0x260] sm:$0xf]
    %v193 = vld [vmem:[#allocation5 + $0x264] sm:$0xff]
    %v194 = vld [vmem:[#allocation5 + $0x26c] sm:$0xf]
    %v195 = vld [vmem:[#allocation5 + $0x270] sm:$0xff]
    %v196 = vld [vmem:[#allocation5 + $0x278] sm:$0xf]
    %v197 = vld [vmem:[#allocation5 + $0x27c] sm:$0xff]
    %v198 = vld [vmem:[#allocation5 + $0x284] sm:$0xf]
    %v199 = vld [vmem:[#allocation5 + $0x288] sm:$0xff]
    %v200 = vld [vmem:[#allocation5 + $0x290] sm:$0xf]
    %v201 = vld [vmem:[#allocation5 + $0x294] sm:$0xff]
    %v202 = vld [vmem:[#allocation5 + $0x29c] sm:$0xf]
    %v203 = vld [vmem:[#allocation5 + $0x2a0] sm:$0xff]
    %v204 = vld [vmem:[#allocation5 + $0x2a8] sm:$0xf]
    %v205 = vld [vmem:[#allocation5 + $0x2ac] sm:$0xff]
    %v206 = vld [vmem:[#allocation5 + $0x2b4] sm:$0xf]
    %v207 = vld [vmem:[#allocation5 + $0x2b8] sm:$0xff]
    %v208 = vld [vmem:[#allocation5 + $0x2c0] sm:$0xf]
    %v209 = vld [vmem:[#allocation5 + $0x2c4] sm:$0xff]
    %v210 = vld [vmem:[#allocation5 + $0x2cc] sm:$0xf]
    %v211 = vld [vmem:[#allocation5 + $0x2d0] sm:$0xff]
    %v212 = vld [vmem:[#allocation5 + $0x2d8] sm:$0xf]
    %v213 = vld [vmem:[#allocation5 + $0x2dc] sm:$0xff]
    %v214 = vld [vmem:[#allocation5 + $0x2e4] sm:$0xf]
    %v215 = vld [vmem:[#allocation5 + $0x2e8] sm:$0xff]
    %v216 = vld [vmem:[#allocation5 + $0x2f0] sm:$0xf]
    %v217 = vld [vmem:[#allocation5 + $0x2f4] sm:$0xff]
    %v218 = vld [vmem:[#allocation5 + $0x2fc] sm:$0xf]
    %v219 = vld [vmem:[#allocation5 + $0x300] sm:$0xff]
    %v220 = vld [vmem:[#allocation5 + $0x308] sm:$0xf]
    %v221 = vld [vmem:[#allocation5 + $0x30c] sm:$0xff]
    %v222 = vld [vmem:[#allocation5 + $0x314] sm:$0xf]
    %v223 = vld [vmem:[#allocation5 + $0x318] sm:$0xff]
    %v224 = vld [vmem:[#allocation5 + $0x320] sm:$0xf]
    %v225 = vld [vmem:[#allocation5 + $0x324] sm:$0xff]
    %v226 = vld [vmem:[#allocation5 + $0x32c] sm:$0xf]
    %v227 = vld [vmem:[#allocation5 + $0x330] sm:$0xff]
    %v228 = vld [vmem:[#allocation5 + $0x338] sm:$0xf]
    %v229 = vld [vmem:[#allocation5 + $0x33c] sm:$0xff]
    %v230 = vld [vmem:[#allocation5 + $0x344] sm:$0xf]
    %v231 = vld [vmem:[#allocation5 + $0x348] sm:$0xff]
    %v232 = vld [vmem:[#allocation5 + $0x350] sm:$0xf]
    %v233 = vld [vmem:[#allocation5 + $0x354] sm:$0xff]
    %v234 = vld [vmem:[#allocation5 + $0x35c] sm:$0xf]
    %v235 = vld [vmem:[#allocation5 + $0x360] sm:$0xff]
    %v236 = vld [vmem:[#allocation5 + $0x368] sm:$0xf]
    %v237 = vld [vmem:[#allocation5 + $0x36c] sm:$0xff]
    %v238 = vld [vmem:[#allocation5 + $0x374] sm:$0xf]
    %v239 = vld [vmem:[#allocation5 + $0x378] sm:$0xff]
    %v240 = vld [vmem:[#allocation5 + $0x380] sm:$0xf]
    %v241 = vld [vmem:[#allocation5 + $0x384] sm:$0xff]
    %v242 = vld [vmem:[#allocation5 + $0x38c] sm:$0xf]
    %v243 = vld [vmem:[#allocation5 + $0x390] sm:$0xff]
    %v244 = vld [vmem:[#allocation5 + $0x398] sm:$0xf]
    %v245 = vld [vmem:[#allocation5 + $0x39c] sm:$0xff]
    %v246 = vld [vmem:[#allocation5 + $0x3a4] sm:$0xf]
    %v247 = vld [vmem:[#allocation5 + $0x3a8] sm:$0xff]
    %v248 = vld [vmem:[#allocation5 + $0x3b0] sm:$0xf]
    %v249 = vld [vmem:[#allocation5 + $0x3b4] sm:$0xff]
    %v250 = vld [vmem:[#allocation5 + $0x3bc] sm:$0xf]
    %v251 = vld [vmem:[#allocation5 + $0x3c0] sm:$0xff]
    %v252 = vld [vmem:[#allocation5 + $0x3c8] sm:$0xf]
    %v253 = vld [vmem:[#allocation5 + $0x3cc] sm:$0xff]
    %v254 = vld [vmem:[#allocation5 + $0x3d4] sm:$0xf]
    %v255 = vld [vmem:[#allocation5 + $0x3d8] sm:$0xff]
    %v256 = vld [vmem:[#allocation5 + $0x3e0] sm:$0xf]
    %v257 = vld [vmem:[#allocation5 + $0x3e4] sm:$0xff]
    %v258 = vld [vmem:[#allocation5 + $0x3ec] sm:$0xf]
    %v259 = vld [vmem:[#allocation5 + $0x3f0] sm:$0xff]
    %v260 = vld [vmem:[#allocation5 + $0x3f8] sm:$0xf]
    %v261 = vld [vmem:[#allocation5 + $0x3fc] sm:$0xff]
    %v262 = vld [vmem:[#allocation5 + $0x404] sm:$0xf]
    %v263 = vld [vmem:[#allocation5 + $0x408] sm:$0xff]
    %v264 = vld [vmem:[#allocation5 + $0x410] sm:$0xf]
    %v265 = vld [vmem:[#allocation5 + $0x414] sm:$0xff]
    %v266 = vld [vmem:[#allocation5 + $0x41c] sm:$0xf]
    %v267 = vld [vmem:[#allocation5 + $0x420] sm:$0xff]
    %v268 = vld [vmem:[#allocation5 + $0x428] sm:$0xf]
    %v269 = vld [vmem:[#allocation5 + $0x42c] sm:$0xff]
    %v270 = vld [vmem:[#allocation5 + $0x434] sm:$0xf]
    %v271 = vld [vmem:[#allocation5 + $0x438] sm:$0xff]
    %v272 = vld [vmem:[#allocation5 + $0x440] sm:$0xf]
    %v273 = vld [vmem:[#allocation5 + $0x444] sm:$0xff]
    %v274 = vld [vmem:[#allocation5 + $0x44c] sm:$0xf]
    %v275 = vld [vmem:[#allocation5 + $0x450] sm:$0xff]
    %v276 = vld [vmem:[#allocation5 + $0x458] sm:$0xf]
    %v277 = vld [vmem:[#allocation5 + $0x45c] sm:$0xff]
    %v278 = vld [vmem:[#allocation5 + $0x464] sm:$0xf]
    %v279 = vld [vmem:[#allocation5 + $0x468] sm:$0xff]
    %v280 = vld [vmem:[#allocation5 + $0x470] sm:$0xf]
    %v281 = vld [vmem:[#allocation5 + $0x474] sm:$0xff]
    %v282 = vld [vmem:[#allocation5 + $0x47c] sm:$0xf]
    %v283 = vld [vmem:[#allocation5 + $0x480] sm:$0xff]
    %v284 = vld [vmem:[#allocation5 + $0x488] sm:$0xf]
    %v285 = vld [vmem:[#allocation5 + $0x48c] sm:$0xff]
    %v286 = vld [vmem:[#allocation5 + $0x494] sm:$0xf]
    %v287 = vld [vmem:[#allocation5 + $0x498] sm:$0xff]
    %v288 = vld [vmem:[#allocation5 + $0x4a0] sm:$0xf]
    %v289 = vld [vmem:[#allocation5 + $0x4a4] sm:$0xff]
    %v290 = vld [vmem:[#allocation5 + $0x4ac] sm:$0xf]
    %v291 = vld [vmem:[#allocation5 + $0x4b0] sm:$0xff]
    %v292 = vld [vmem:[#allocation5 + $0x4b8] sm:$0xf]
    %v293 = vld [vmem:[#allocation5 + $0x4bc] sm:$0xff]
    %v294 = vld [vmem:[#allocation5 + $0x4c4] sm:$0xf]
    %v295 = vld [vmem:[#allocation5 + $0x4c8] sm:$0xff]
    %v296 = vld [vmem:[#allocation5 + $0x4d0] sm:$0xf]
    %v297 = vld [vmem:[#allocation5 + $0x4d4] sm:$0xff]
    %v298 = vld [vmem:[#allocation5 + $0x4dc] sm:$0xf]
    %v299 = vld [vmem:[#allocation5 + $0x4e0] sm:$0xff]
    %v300 = vld [vmem:[#allocation5 + $0x4e8] sm:$0xf]
    %v301 = vld [vmem:[#allocation5 + $0x4ec] sm:$0xff]
    %v302 = vld [vmem:[#allocation5 + $0x4f4] sm:$0xf]
    %v303 = vld [vmem:[#allocation5 + $0x4f8] sm:$0xff]
    %v304 = vld [vmem:[#allocation5 + $0x500] sm:$0xf]
    %v305 = vld [vmem:[#allocation5 + $0x504] sm:$0xff]
    %v306 = vld [vmem:[#allocation5 + $0x50c] sm:$0xf]
    %v307 = vld [vmem:[#allocation5 + $0x510] sm:$0xff]
    %v308 = vld [vmem:[#allocation5 + $0x518] sm:$0xf]
    %v309 = vld [vmem:[#allocation5 + $0x51c] sm:$0xff]
    %v310 = vld [vmem:[#allocation5 + $0x524] sm:$0xf]
    %v311 = vld [vmem:[#allocation5 + $0x528] sm:$0xff]
    %v312 = vld [vmem:[#allocation5 + $0x530] sm:$0xf]
    %v313 = vld [vmem:[#allocation5 + $0x534] sm:$0xff]
    %v314 = vld [vmem:[#allocation5 + $0x53c] sm:$0xf]
    %v315 = vld [vmem:[%s2] sm:$0x7]
    %v317 = vlaneseq
    %v318 = vshrl.u32 %v317, 7
    %v319 = vsub.s32 0, %v318
    %v320 = vrot.slane %v315, %v319
    %v321 = vlaneseq
    %v322 = vshrl.u32 %v321, 7
    %v323 = vsub.s32 1, %v322
    %v324 = vrot.slane %v315, %v323
    %v325 = vlaneseq
    %v326 = vshrl.u32 %v325, 7
    %v327 = vsub.s32 2, %v326
    %v328 = vrot.slane %v315, %v327
    %v340 = vunpack.c.l.b16 %v83
    %v341 = vunpack.c.h.b16 %v83
    %v342 = vunpack.c.l.b16 %v84
    %v343 = vunpack.c.h.b16 %v84
    %v344 = vunpack.c.l.b16 %v85
    %v345 = vunpack.c.h.b16 %v85
    %v346 = vunpack.c.l.b16 %v86
    %v347 = vunpack.c.l.b16 %v87
    %v348 = vunpack.c.h.b16 %v87
    %v349 = vunpack.c.l.b16 %v88
    %v350 = vunpack.c.h.b16 %v88
    %v351 = vunpack.c.l.b16 %v89
    %v352 = vunpack.c.h.b16 %v89
    %v353 = vunpack.c.l.b16 %v90
    %v354 = vpack.c.b16 %v347, %v340
    %v355 = vpack.c.b16 %v348, %v341
    %v356 = vpack.c.b16 %v349, %v342
    %v357 = vpack.c.b16 %v350, %v343
    %v358 = vpack.c.b16 %v351, %v344
    %v359 = vpack.c.b16 %v352, %v345
    %v360 = vpack.c.b16 %v353, %v346
    %v592 = vunpack.c.l.b16 %v91
    %v593 = vunpack.c.h.b16 %v91
    %v594 = vunpack.c.l.b16 %v92
    %v595 = vunpack.c.l.b16 %v93
    %v596 = vunpack.c.h.b16 %v93
    %v597 = vunpack.c.l.b16 %v94
    %v598 = vunpack.c.l.b16 %v95
    %v599 = vunpack.c.h.b16 %v95
    %v600 = vunpack.c.l.b16 %v96
    %v601 = vunpack.c.l.b16 %v97
    %v602 = vunpack.c.h.b16 %v97
    %v603 = vunpack.c.l.b16 %v98
    %v604 = vunpack.c.l.b16 %v99
    %v605 = vunpack.c.h.b16 %v99
    %v606 = vunpack.c.l.b16 %v100
    %v607 = vunpack.c.l.b16 %v101
    %v608 = vunpack.c.h.b16 %v101
    %v609 = vunpack.c.l.b16 %v102
    %v610 = vunpack.c.l.b16 %v103
    %v611 = vunpack.c.h.b16 %v103
    %v612 = vunpack.c.l.b16 %v104
    %v613 = vunpack.c.l.b16 %v105
    %v614 = vunpack.c.h.b16 %v105
    %v615 = vunpack.c.l.b16 %v106
    %v616 = vunpack.c.l.b16 %v107
    %v617 = vunpack.c.h.b16 %v107
    %v618 = vunpack.c.l.b16 %v108
    %v619 = vunpack.c.l.b16 %v109
    %v620 = vunpack.c.h.b16 %v109
    %v621 = vunpack.c.l.b16 %v110
    %v622 = vunpack.c.l.b16 %v111
    %v623 = vunpack.c.h.b16 %v111
    %v624 = vunpack.c.l.b16 %v112
    %v625 = vunpack.c.l.b16 %v113
    %v626 = vunpack.c.h.b16 %v113
    %v627 = vunpack.c.l.b16 %v114
    %v628 = vunpack.c.l.b16 %v115
    %v629 = vunpack.c.h.b16 %v115
    %v630 = vunpack.c.l.b16 %v116
    %v631 = vunpack.c.l.b16 %v117
    %v632 = vunpack.c.h.b16 %v117
    %v633 = vunpack.c.l.b16 %v118
    %v634 = vunpack.c.l.b16 %v119
    %v635 = vunpack.c.h.b16 %v119
    %v636 = vunpack.c.l.b16 %v120
    %v637 = vunpack.c.l.b16 %v121
    %v638 = vunpack.c.h.b16 %v121
    %v639 = vunpack.c.l.b16 %v122
    %v640 = vunpack.c.l.b16 %v123
    %v641 = vunpack.c.h.b16 %v123
    %v642 = vunpack.c.l.b16 %v124
    %v643 = vunpack.c.l.b16 %v125
    %v644 = vunpack.c.h.b16 %v125
    %v645 = vunpack.c.l.b16 %v126
    %v646 = vunpack.c.l.b16 %v127
    %v647 = vunpack.c.h.b16 %v127
    %v648 = vunpack.c.l.b16 %v128
    %v649 = vunpack.c.l.b16 %v129
    %v650 = vunpack.c.h.b16 %v129
    %v651 = vunpack.c.l.b16 %v130
    %v652 = vunpack.c.l.b16 %v131
    %v653 = vunpack.c.h.b16 %v131
    %v654 = vunpack.c.l.b16 %v132
    %v655 = vunpack.c.l.b16 %v133
    %v656 = vunpack.c.h.b16 %v133
    %v657 = vunpack.c.l.b16 %v134
    %v658 = vunpack.c.l.b16 %v135
    %v659 = vunpack.c.h.b16 %v135
    %v660 = vunpack.c.l.b16 %v136
    %v661 = vunpack.c.l.b16 %v137
    %v662 = vunpack.c.h.b16 %v137
    %v663 = vunpack.c.l.b16 %v138
    %v664 = vunpack.c.l.b16 %v139
    %v665 = vunpack.c.h.b16 %v139
    %v666 = vunpack.c.l.b16 %v140
    %v667 = vunpack.c.l.b16 %v141
    %v668 = vunpack.c.h.b16 %v141
    %v669 = vunpack.c.l.b16 %v142
    %v670 = vunpack.c.l.b16 %v143
    %v671 = vunpack.c.h.b16 %v143
    %v672 = vunpack.c.l.b16 %v144
    %v673 = vunpack.c.l.b16 %v145
    %v674 = vunpack.c.h.b16 %v145
    %v675 = vunpack.c.l.b16 %v146
    %v676 = vunpack.c.l.b16 %v147
    %v677 = vunpack.c.h.b16 %v147
    %v678 = vunpack.c.l.b16 %v148
    %v679 = vunpack.c.l.b16 %v149
    %v680 = vunpack.c.h.b16 %v149
    %v681 = vunpack.c.l.b16 %v150
    %v682 = vunpack.c.l.b16 %v151
    %v683 = vunpack.c.h.b16 %v151
    %v684 = vunpack.c.l.b16 %v152
    %v685 = vunpack.c.l.b16 %v153
    %v686 = vunpack.c.h.b16 %v153
    %v687 = vunpack.c.l.b16 %v154
    %v688 = vunpack.c.l.b16 %v155
    %v689 = vunpack.c.h.b16 %v155
    %v690 = vunpack.c.l.b16 %v156
    %v691 = vunpack.c.l.b16 %v157
    %v692 = vunpack.c.h.b16 %v157
    %v693 = vunpack.c.l.b16 %v158
    %v694 = vunpack.c.l.b16 %v159
    %v695 = vunpack.c.h.b16 %v159
    %v696 = vunpack.c.l.b16 %v160
    %v697 = vunpack.c.l.b16 %v161
    %v698 = vunpack.c.h.b16 %v161
    %v699 = vunpack.c.l.b16 %v162
    %v700 = vunpack.c.l.b16 %v163
    %v701 = vunpack.c.h.b16 %v163
    %v702 = vunpack.c.l.b16 %v164
    %v703 = vunpack.c.l.b16 %v165
    %v704 = vunpack.c.h.b16 %v165
    %v705 = vunpack.c.l.b16 %v166
    %v706 = vunpack.c.l.b16 %v167
    %v707 = vunpack.c.h.b16 %v167
    %v708 = vunpack.c.l.b16 %v168
    %v709 = vunpack.c.l.b16 %v169
    %v710 = vunpack.c.h.b16 %v169
    %v711 = vunpack.c.l.b16 %v170
    %v712 = vunpack.c.l.b16 %v171
    %v713 = vunpack.c.h.b16 %v171
    %v714 = vunpack.c.l.b16 %v172
    %v715 = vunpack.c.l.b16 %v173
    %v716 = vunpack.c.h.b16 %v173
    %v717 = vunpack.c.l.b16 %v174
    %v718 = vunpack.c.l.b16 %v175
    %v719 = vunpack.c.h.b16 %v175
    %v720 = vunpack.c.l.b16 %v176
    %v721 = vunpack.c.l.b16 %v177
    %v722 = vunpack.c.h.b16 %v177
    %v723 = vunpack.c.l.b16 %v178
    %v724 = vunpack.c.l.b16 %v179
    %v725 = vunpack.c.h.b16 %v179
    %v726 = vunpack.c.l.b16 %v180
    %v727 = vunpack.c.l.b16 %v181
    %v728 = vunpack.c.h.b16 %v181
    %v729 = vunpack.c.l.b16 %v182
    %v730 = vunpack.c.l.b16 %v183
    %v731 = vunpack.c.h.b16 %v183
    %v732 = vunpack.c.l.b16 %v184
    %v733 = vunpack.c.l.b16 %v185
    %v734 = vunpack.c.h.b16 %v185
    %v735 = vunpack.c.l.b16 %v186
    %v736 = vunpack.c.l.b16 %v187
    %v737 = vunpack.c.h.b16 %v187
    %v738 = vunpack.c.l.b16 %v188
    %v739 = vunpack.c.l.b16 %v189
    %v740 = vunpack.c.h.b16 %v189
    %v741 = vunpack.c.l.b16 %v190
    %v742 = vunpack.c.l.b16 %v191
    %v743 = vunpack.c.h.b16 %v191
    %v744 = vunpack.c.l.b16 %v192
    %v745 = vunpack.c.l.b16 %v193
    %v746 = vunpack.c.h.b16 %v193
    %v747 = vunpack.c.l.b16 %v194
    %v748 = vunpack.c.l.b16 %v195
    %v749 = vunpack.c.h.b16 %v195
    %v750 = vunpack.c.l.b16 %v196
    %v751 = vunpack.c.l.b16 %v197
    %v752 = vunpack.c.h.b16 %v197
    %v753 = vunpack.c.l.b16 %v198
    %v754 = vunpack.c.l.b16 %v199
    %v755 = vunpack.c.h.b16 %v199
    %v756 = vunpack.c.l.b16 %v200
    %v757 = vunpack.c.l.b16 %v201
    %v758 = vunpack.c.h.b16 %v201
    %v759 = vunpack.c.l.b16 %v202
    %v760 = vunpack.c.l.b16 %v203
    %v761 = vunpack.c.h.b16 %v203
    %v762 = vunpack.c.l.b16 %v204
    %v763 = vunpack.c.l.b16 %v205
    %v764 = vunpack.c.h.b16 %v205
    %v765 = vunpack.c.l.b16 %v206
    %v766 = vunpack.c.l.b16 %v207
    %v767 = vunpack.c.h.b16 %v207
    %v768 = vunpack.c.l.b16 %v208
    %v769 = vunpack.c.l.b16 %v209
    %v770 = vunpack.c.h.b16 %v209
    %v771 = vunpack.c.l.b16 %v210
    %v772 = vunpack.c.l.b16 %v211
    %v773 = vunpack.c.h.b16 %v211
    %v774 = vunpack.c.l.b16 %v212
    %v775 = vunpack.c.l.b16 %v213
    %v776 = vunpack.c.h.b16 %v213
    %v777 = vunpack.c.l.b16 %v214
    %v778 = vunpack.c.l.b16 %v215
    %v779 = vunpack.c.h.b16 %v215
    %v780 = vunpack.c.l.b16 %v216
    %v781 = vunpack.c.l.b16 %v217
    %v782 = vunpack.c.h.b16 %v217
    %v783 = vunpack.c.l.b16 %v218
    %v784 = vunpack.c.l.b16 %v219
    %v785 = vunpack.c.h.b16 %v219
    %v786 = vunpack.c.l.b16 %v220
    %v787 = vunpack.c.l.b16 %v221
    %v788 = vunpack.c.h.b16 %v221
    %v789 = vunpack.c.l.b16 %v222
    %v790 = vunpack.c.l.b16 %v223
    %v791 = vunpack.c.h.b16 %v223
    %v792 = vunpack.c.l.b16 %v224
    %v793 = vunpack.c.l.b16 %v225
    %v794 = vunpack.c.h.b16 %v225
    %v795 = vunpack.c.l.b16 %v226
    %v796 = vunpack.c.l.b16 %v227
    %v797 = vunpack.c.h.b16 %v227
    %v798 = vunpack.c.l.b16 %v228
    %v799 = vunpack.c.l.b16 %v229
    %v800 = vunpack.c.h.b16 %v229
    %v801 = vunpack.c.l.b16 %v230
    %v802 = vunpack.c.l.b16 %v231
    %v803 = vunpack.c.h.b16 %v231
    %v804 = vunpack.c.l.b16 %v232
    %v805 = vunpack.c.l.b16 %v233
    %v806 = vunpack.c.h.b16 %v233
    %v807 = vunpack.c.l.b16 %v234
    %v808 = vunpack.c.l.b16 %v235
    %v809 = vunpack.c.h.b16 %v235
    %v810 = vunpack.c.l.b16 %v236
    %v811 = vunpack.c.l.b16 %v237
    %v812 = vunpack.c.h.b16 %v237
    %v813 = vunpack.c.l.b16 %v238
    %v814 = vunpack.c.l.b16 %v239
    %v815 = vunpack.c.h.b16 %v239
    %v816 = vunpack.c.l.b16 %v240
    %v817 = vunpack.c.l.b16 %v241
    %v818 = vunpack.c.h.b16 %v241
    %v819 = vunpack.c.l.b16 %v242
    %v820 = vunpack.c.l.b16 %v243
    %v821 = vunpack.c.h.b16 %v243
    %v822 = vunpack.c.l.b16 %v244
    %v823 = vunpack.c.l.b16 %v245
    %v824 = vunpack.c.h.b16 %v245
    %v825 = vunpack.c.l.b16 %v246
    %v826 = vunpack.c.l.b16 %v247
    %v827 = vunpack.c.h.b16 %v247
    %v828 = vunpack.c.l.b16 %v248
    %v829 = vunpack.c.l.b16 %v249
    %v830 = vunpack.c.h.b16 %v249
    %v831 = vunpack.c.l.b16 %v250
    %v832 = vunpack.c.l.b16 %v251
    %v833 = vunpack.c.h.b16 %v251
    %v834 = vunpack.c.l.b16 %v252
    %v835 = vunpack.c.l.b16 %v253
    %v836 = vunpack.c.h.b16 %v253
    %v837 = vunpack.c.l.b16 %v254
    %v838 = vunpack.c.l.b16 %v255
    %v839 = vunpack.c.h.b16 %v255
    %v840 = vunpack.c.l.b16 %v256
    %v841 = vunpack.c.l.b16 %v257
    %v842 = vunpack.c.h.b16 %v257
    %v843 = vunpack.c.l.b16 %v258
    %v844 = vunpack.c.l.b16 %v259
    %v845 = vunpack.c.h.b16 %v259
    %v846 = vunpack.c.l.b16 %v260
    %v847 = vunpack.c.l.b16 %v261
    %v848 = vunpack.c.h.b16 %v261
    %v849 = vunpack.c.l.b16 %v262
    %v850 = vunpack.c.l.b16 %v263
    %v851 = vunpack.c.h.b16 %v263
    %v852 = vunpack.c.l.b16 %v264
    %v853 = vunpack.c.l.b16 %v265
    %v854 = vunpack.c.h.b16 %v265
    %v855 = vunpack.c.l.b16 %v266
    %v856 = vunpack.c.l.b16 %v267
    %v857 = vunpack.c.h.b16 %v267
    %v858 = vunpack.c.l.b16 %v268
    %v859 = vunpack.c.l.b16 %v269
    %v860 = vunpack.c.h.b16 %v269
    %v861 = vunpack.c.l.b16 %v270
    %v862 = vunpack.c.l.b16 %v271
    %v863 = vunpack.c.h.b16 %v271
    %v864 = vunpack.c.l.b16 %v272
    %v865 = vunpack.c.l.b16 %v273
    %v866 = vunpack.c.h.b16 %v273
    %v867 = vunpack.c.l.b16 %v274
    %v868 = vunpack.c.l.b16 %v275
    %v869 = vunpack.c.h.b16 %v275
    %v870 = vunpack.c.l.b16 %v276
    %v871 = vunpack.c.l.b16 %v277
    %v872 = vunpack.c.h.b16 %v277
    %v873 = vunpack.c.l.b16 %v278
    %v874 = vunpack.c.l.b16 %v279
    %v875 = vunpack.c.h.b16 %v279
    %v876 = vunpack.c.l.b16 %v280
    %v877 = vunpack.c.l.b16 %v281
    %v878 = vunpack.c.h.b16 %v281
    %v879 = vunpack.c.l.b16 %v282
    %v880 = vunpack.c.l.b16 %v283
    %v881 = vunpack.c.h.b16 %v283
    %v882 = vunpack.c.l.b16 %v284
    %v883 = vunpack.c.l.b16 %v285
    %v884 = vunpack.c.h.b16 %v285
    %v885 = vunpack.c.l.b16 %v286
    %v886 = vunpack.c.l.b16 %v287
    %v887 = vunpack.c.h.b16 %v287
    %v888 = vunpack.c.l.b16 %v288
    %v889 = vunpack.c.l.b16 %v289
    %v890 = vunpack.c.h.b16 %v289
    %v891 = vunpack.c.l.b16 %v290
    %v892 = vunpack.c.l.b16 %v291
    %v893 = vunpack.c.h.b16 %v291
    %v894 = vunpack.c.l.b16 %v292
    %v895 = vunpack.c.l.b16 %v293
    %v896 = vunpack.c.h.b16 %v293
    %v897 = vunpack.c.l.b16 %v294
    %v898 = vunpack.c.l.b16 %v295
    %v899 = vunpack.c.h.b16 %v295
    %v900 = vunpack.c.l.b16 %v296
    %v901 = vunpack.c.l.b16 %v297
    %v902 = vunpack.c.h.b16 %v297
    %v903 = vunpack.c.l.b16 %v298
    %v904 = vunpack.c.l.b16 %v299
    %v905 = vunpack.c.h.b16 %v299
    %v906 = vunpack.c.l.b16 %v300
    %v907 = vunpack.c.l.b16 %v301
    %v908 = vunpack.c.h.b16 %v301
    %v909 = vunpack.c.l.b16 %v302
    %v910 = vunpack.c.l.b16 %v303
    %v911 = vunpack.c.h.b16 %v303
    %v912 = vunpack.c.l.b16 %v304
    %v913 = vunpack.c.l.b16 %v305
    %v914 = vunpack.c.h.b16 %v305
    %v915 = vunpack.c.l.b16 %v306
    %v916 = vunpack.c.l.b16 %v307
    %v917 = vunpack.c.h.b16 %v307
    %v918 = vunpack.c.l.b16 %v308
    %v919 = vunpack.c.l.b16 %v309
    %v920 = vunpack.c.h.b16 %v309
    %v921 = vunpack.c.l.b16 %v310
    %v922 = vunpack.c.l.b16 %v311
    %v923 = vunpack.c.h.b16 %v311
    %v924 = vunpack.c.l.b16 %v312
    %v925 = vunpack.c.l.b16 %v313
    %v926 = vunpack.c.h.b16 %v313
    %v927 = vunpack.c.l.b16 %v314
    %v928 = vpack.c.b16 %v595, %v592
    %v929 = vpack.c.b16 %v596, %v593
    %v930 = vpack.c.b16 %v597, %v594
    %v931 = vpack.c.b16 %v601, %v598
    %v932 = vpack.c.b16 %v602, %v599
    %v933 = vpack.c.b16 %v603, %v600
    %v934 = vpack.c.b16 %v607, %v604
    %v935 = vpack.c.b16 %v608, %v605
    %v936 = vpack.c.b16 %v609, %v606
    %v937 = vpack.c.b16 %v613, %v610
    %v938 = vpack.c.b16 %v614, %v611
    %v939 = vpack.c.b16 %v615, %v612
    %v940 = vpack.c.b16 %v619, %v616
    %v941 = vpack.c.b16 %v620, %v617
    %v942 = vpack.c.b16 %v621, %v618
    %v943 = vpack.c.b16 %v625, %v622
    %v944 = vpack.c.b16 %v626, %v623
    %v945 = vpack.c.b16 %v627, %v624
    %v946 = vpack.c.b16 %v631, %v628
    %v947 = vpack.c.b16 %v632, %v629
    %v948 = vpack.c.b16 %v633, %v630
    %v949 = vpack.c.b16 %v637, %v634
    %v950 = vpack.c.b16 %v638, %v635
    %v951 = vpack.c.b16 %v639, %v636
    %v952 = vpack.c.b16 %v643, %v640
    %v953 = vpack.c.b16 %v644, %v641
    %v954 = vpack.c.b16 %v645, %v642
    %v955 = vpack.c.b16 %v649, %v646
    %v956 = vpack.c.b16 %v650, %v647
    %v957 = vpack.c.b16 %v651, %v648
    %v958 = vpack.c.b16 %v655, %v652
    %v959 = vpack.c.b16 %v656, %v653
    %v960 = vpack.c.b16 %v657, %v654
    %v961 = vpack.c.b16 %v661, %v658
    %v962 = vpack.c.b16 %v662, %v659
    %v963 = vpack.c.b16 %v663, %v660
    %v964 = vpack.c.b16 %v667, %v664
    %v965 = vpack.c.b16 %v668, %v665
    %v966 = vpack.c.b16 %v669, %v666
    %v967 = vpack.c.b16 %v673, %v670
    %v968 = vpack.c.b16 %v674, %v671
    %v969 = vpack.c.b16 %v675, %v672
    %v970 = vpack.c.b16 %v679, %v676
    %v971 = vpack.c.b16 %v680, %v677
    %v972 = vpack.c.b16 %v681, %v678
    %v973 = vpack.c.b16 %v685, %v682
    %v974 = vpack.c.b16 %v686, %v683
    %v975 = vpack.c.b16 %v687, %v684
    %v976 = vpack.c.b16 %v691, %v688
    %v977 = vpack.c.b16 %v692, %v689
    %v978 = vpack.c.b16 %v693, %v690
    %v979 = vpack.c.b16 %v697, %v694
    %v980 = vpack.c.b16 %v698, %v695
    %v981 = vpack.c.b16 %v699, %v696
    %v982 = vpack.c.b16 %v703, %v700
    %v983 = vpack.c.b16 %v704, %v701
    %v984 = vpack.c.b16 %v705, %v702
    %v985 = vpack.c.b16 %v709, %v706
    %v986 = vpack.c.b16 %v710, %v707
    %v987 = vpack.c.b16 %v711, %v708
    %v988 = vpack.c.b16 %v715, %v712
    %v989 = vpack.c.b16 %v716, %v713
    %v990 = vpack.c.b16 %v717, %v714
    %v991 = vpack.c.b16 %v721, %v718
    %v992 = vpack.c.b16 %v722, %v719
    %v993 = vpack.c.b16 %v723, %v720
    %v994 = vpack.c.b16 %v727, %v724
    %v995 = vpack.c.b16 %v728, %v725
    %v996 = vpack.c.b16 %v729, %v726
    %v997 = vpack.c.b16 %v733, %v730
    %v998 = vpack.c.b16 %v734, %v731
    %v999 = vpack.c.b16 %v735, %v732
    %v1000 = vpack.c.b16 %v739, %v736
    %v1001 = vpack.c.b16 %v740, %v737
    %v1002 = vpack.c.b16 %v741, %v738
    %v1003 = vpack.c.b16 %v745, %v742
    %v1004 = vpack.c.b16 %v746, %v743
    %v1005 = vpack.c.b16 %v747, %v744
    %v1006 = vpack.c.b16 %v751, %v748
    %v1007 = vpack.c.b16 %v752, %v749
    %v1008 = vpack.c.b16 %v753, %v750
    %v1009 = vpack.c.b16 %v757, %v754
    %v1010 = vpack.c.b16 %v758, %v755
    %v1011 = vpack.c.b16 %v759, %v756
    %v1012 = vpack.c.b16 %v763, %v760
    %v1013 = vpack.c.b16 %v764, %v761
    %v1014 = vpack.c.b16 %v765, %v762
    %v1015 = vpack.c.b16 %v769, %v766
    %v1016 = vpack.c.b16 %v770, %v767
    %v1017 = vpack.c.b16 %v771, %v768
    %v1018 = vpack.c.b16 %v775, %v772
    %v1019 = vpack.c.b16 %v776, %v773
    %v1020 = vpack.c.b16 %v777, %v774
    %v1021 = vpack.c.b16 %v781, %v778
    %v1022 = vpack.c.b16 %v782, %v779
    %v1023 = vpack.c.b16 %v783, %v780
    %v1024 = vpack.c.b16 %v787, %v784
    %v1025 = vpack.c.b16 %v788, %v785
    %v1026 = vpack.c.b16 %v789, %v786
    %v1027 = vpack.c.b16 %v793, %v790
    %v1028 = vpack.c.b16 %v794, %v791
    %v1029 = vpack.c.b16 %v795, %v792
    %v1030 = vpack.c.b16 %v799, %v796
    %v1031 = vpack.c.b16 %v800, %v797
    %v1032 = vpack.c.b16 %v801, %v798
    %v1033 = vpack.c.b16 %v805, %v802
    %v1034 = vpack.c.b16 %v806, %v803
    %v1035 = vpack.c.b16 %v807, %v804
    %v1036 = vpack.c.b16 %v811, %v808
    %v1037 = vpack.c.b16 %v812, %v809
    %v1038 = vpack.c.b16 %v813, %v810
    %v1039 = vpack.c.b16 %v817, %v814
    %v1040 = vpack.c.b16 %v818, %v815
    %v1041 = vpack.c.b16 %v819, %v816
    %v1042 = vpack.c.b16 %v823, %v820
    %v1043 = vpack.c.b16 %v824, %v821
    %v1044 = vpack.c.b16 %v825, %v822
    %v1045 = vpack.c.b16 %v829, %v826
    %v1046 = vpack.c.b16 %v830, %v827
    %v1047 = vpack.c.b16 %v831, %v828
    %v1048 = vpack.c.b16 %v835, %v832
    %v1049 = vpack.c.b16 %v836, %v833
    %v1050 = vpack.c.b16 %v837, %v834
    %v1051 = vpack.c.b16 %v841, %v838
    %v1052 = vpack.c.b16 %v842, %v839
    %v1053 = vpack.c.b16 %v843, %v840
    %v1054 = vpack.c.b16 %v847, %v844
    %v1055 = vpack.c.b16 %v848, %v845
    %v1056 = vpack.c.b16 %v849, %v846
    %v1057 = vpack.c.b16 %v853, %v850
    %v1058 = vpack.c.b16 %v854, %v851
    %v1059 = vpack.c.b16 %v855, %v852
    %v1060 = vpack.c.b16 %v859, %v856
    %v1061 = vpack.c.b16 %v860, %v857
    %v1062 = vpack.c.b16 %v861, %v858
    %v1063 = vpack.c.b16 %v865, %v862
    %v1064 = vpack.c.b16 %v866, %v863
    %v1065 = vpack.c.b16 %v867, %v864
    %v1066 = vpack.c.b16 %v871, %v868
    %v1067 = vpack.c.b16 %v872, %v869
    %v1068 = vpack.c.b16 %v873, %v870
    %v1069 = vpack.c.b16 %v877, %v874
    %v1070 = vpack.c.b16 %v878, %v875
    %v1071 = vpack.c.b16 %v879, %v876
    %v1072 = vpack.c.b16 %v883, %v880
    %v1073 = vpack.c.b16 %v884, %v881
    %v1074 = vpack.c.b16 %v885, %v882
    %v1075 = vpack.c.b16 %v889, %v886
    %v1076 = vpack.c.b16 %v890, %v887
    %v1077 = vpack.c.b16 %v891, %v888
    %v1078 = vpack.c.b16 %v895, %v892
    %v1079 = vpack.c.b16 %v896, %v893
    %v1080 = vpack.c.b16 %v897, %v894
    %v1081 = vpack.c.b16 %v901, %v898
    %v1082 = vpack.c.b16 %v902, %v899
    %v1083 = vpack.c.b16 %v903, %v900
    %v1084 = vpack.c.b16 %v907, %v904
    %v1085 = vpack.c.b16 %v908, %v905
    %v1086 = vpack.c.b16 %v909, %v906
    %v1087 = vpack.c.b16 %v913, %v910
    %v1088 = vpack.c.b16 %v914, %v911
    %v1089 = vpack.c.b16 %v915, %v912
    %v1090 = vpack.c.b16 %v919, %v916
    %v1091 = vpack.c.b16 %v920, %v917
    %v1092 = vpack.c.b16 %v921, %v918
    %v1093 = vpack.c.b16 %v925, %v922
    %v1094 = vpack.c.b16 %v926, %v923
    %v1095 = vpack.c.b16 %v927, %v924
    %1264 = vmatprep.subr.bf16.mxu0 %v950
    %1265 = vmatpush1.bf16.msra.mxu0 %v949
    %1266 = vmatprep.subr.bf16.mxu0 %v947
    %1267 = vmatpush1.bf16.msra.mxu0 %v946
    %1268 = vmatprep.subr.bf16.mxu0 %v944
    %1269 = vmatpush1.bf16.msra.mxu0 %v943
    %1270 = vmatprep.subr.bf16.mxu0 %v941
    %1271 = vmatpush1.bf16.msra.mxu0 %v940
    %1272 = vmatprep.subr.bf16.mxu0 %v938
    %1273 = vmatpush1.bf16.msra.mxu0 %v937
    %1274 = vmatprep.subr.bf16.mxu0 %v935
    %1275 = vmatpush1.bf16.msra.mxu0 %v934
    %1276 = vmatprep.subr.bf16.mxu0 %v932
    %1277 = vmatpush1.bf16.msra.mxu0 %v931
    %1278 = vmatprep.subr.bf16.mxu0 %v929
    %1279 = vmatpush1.bf16.msra.mxu0 %v928
    %1280 = vmatprep.subr.bf16.mxu0 %v974
    %1281 = vmatpush2.bf16.msra.mxu0 %v973
    %1282 = vmatprep.subr.bf16.mxu0 %v971
    %1283 = vmatpush2.bf16.msra.mxu0 %v970
    %1284 = vmatprep.subr.bf16.mxu0 %v968
    %1285 = vmatpush2.bf16.msra.mxu0 %v967
    %1286 = vmatprep.subr.bf16.mxu0 %v965
    %1287 = vmatpush2.bf16.msra.mxu0 %v964
    %1288 = vmatprep.subr.bf16.mxu0 %v962
    %1289 = vmatpush2.bf16.msra.mxu0 %v961
    %1290 = vmatprep.subr.bf16.mxu0 %v959
    %1291 = vmatpush2.bf16.msra.mxu0 %v958
    %1292 = vmatprep.subr.bf16.mxu0 %v956
    %1293 = vmatpush2.bf16.msra.mxu0 %v955
    %1294 = vmatprep.subr.bf16.mxu0 %v953
    %1295 = vmatpush2.bf16.msra.mxu0 %v952
    %1296 = vmatprep.mubr.bf16.mxu0 %v355
    %1297 = vmatmul.mubr.bf16.gmra.mxu0 %v354
    %v1298 = vpop.f32.mrf.mxu0
    %v1299 = vadd.f32 %v320, %v1298
    %v1300 = vpop.f32.mrf.mxu0
    %v1301 = vadd.f32 %v324, %v1300
    %v1302 = vpop.f32.mrf.mxu0
    %v1303 = vadd.f32 %v320, %v1302
    %v1304 = vpop.f32.mrf.mxu0
    %v1305 = vadd.f32 %v324, %v1304
    %1306 = vdwg.mxu0
    %1307 = vmatprep.subr.bf16.mxu0 %v998
    %1308 = vmatpush1.bf16.msra.mxu0 %v997
    %1309 = vmatprep.subr.bf16.mxu0 %v995
    %1310 = vmatpush1.bf16.msra.mxu0 %v994
    %1311 = vmatprep.subr.bf16.mxu0 %v992
    %1312 = vmatpush1.bf16.msra.mxu0 %v991
    %1313 = vmatprep.subr.bf16.mxu0 %v989
    %1314 = vmatpush1.bf16.msra.mxu0 %v988
    %1315 = vmatprep.subr.bf16.mxu0 %v986
    %1316 = vmatpush1.bf16.msra.mxu0 %v985
    %1317 = vmatprep.subr.bf16.mxu0 %v983
    %1318 = vmatpush1.bf16.msra.mxu0 %v982
    %1319 = vmatprep.subr.bf16.mxu0 %v980
    %1320 = vmatpush1.bf16.msra.mxu0 %v979
    %1321 = vmatprep.subr.bf16.mxu0 %v977
    %1322 = vmatpush1.bf16.msra.mxu0 %v976
    %1323 = vmatprep.subr.bf16.mxu0 %v1022
    %1324 = vmatpush2.bf16.msra.mxu0 %v1021
    %1325 = vmatprep.subr.bf16.mxu0 %v1019
    %1326 = vmatpush2.bf16.msra.mxu0 %v1018
    %1327 = vmatprep.subr.bf16.mxu0 %v1016
    %1328 = vmatpush2.bf16.msra.mxu0 %v1015
    %1329 = vmatprep.subr.bf16.mxu0 %v1013
    %1330 = vmatpush2.bf16.msra.mxu0 %v1012
    %1331 = vmatprep.subr.bf16.mxu0 %v1010
    %1332 = vmatpush2.bf16.msra.mxu0 %v1009
    %1333 = vmatprep.subr.bf16.mxu0 %v1007
    %1334 = vmatpush2.bf16.msra.mxu0 %v1006
    %1335 = vmatprep.subr.bf16.mxu0 %v1004
    %1336 = vmatpush2.bf16.msra.mxu0 %v1003
    %1337 = vmatprep.subr.bf16.mxu0 %v1001
    %1338 = vmatpush2.bf16.msra.mxu0 %v1000
    %1339 = vmatprep.mubr.bf16.mxu0 %v357
    %1340 = vmatmul.mubr.bf16.gmra.mxu0 %v356
    %v1341 = vpop.f32.mrf.mxu0
    %v1342 = vadd.f32 %v1299, %v1341
    %v1343 = vpop.f32.mrf.mxu0
    %v1344 = vadd.f32 %v1301, %v1343
    %v1345 = vpop.f32.mrf.mxu0
    %v1346 = vadd.f32 %v1303, %v1345
    %v1347 = vpop.f32.mrf.mxu0
    %v1348 = vadd.f32 %v1305, %v1347
    %1349 = vdwg.mxu0
    %1350 = vmatprep.subr.bf16.mxu0 %v1046
    %1351 = vmatpush1.bf16.msra.mxu0 %v1045
    %1352 = vmatprep.subr.bf16.mxu0 %v1043
    %1353 = vmatpush1.bf16.msra.mxu0 %v1042
    %1354 = vmatprep.subr.bf16.mxu0 %v1040
    %1355 = vmatpush1.bf16.msra.mxu0 %v1039
    %1356 = vmatprep.subr.bf16.mxu0 %v1037
    %1357 = vmatpush1.bf16.msra.mxu0 %v1036
    %1358 = vmatprep.subr.bf16.mxu0 %v1034
    %1359 = vmatpush1.bf16.msra.mxu0 %v1033
    %1360 = vmatprep.subr.bf16.mxu0 %v1031
    %1361 = vmatpush1.bf16.msra.mxu0 %v1030
    %1362 = vmatprep.subr.bf16.mxu0 %v1028
    %1363 = vmatpush1.bf16.msra.mxu0 %v1027
    %1364 = vmatprep.subr.bf16.mxu0 %v1025
    %1365 = vmatpush1.bf16.msra.mxu0 %v1024
    %1366 = vmatprep.subr.bf16.mxu0 %v1070
    %1367 = vmatpush2.bf16.msra.mxu0 %v1069
    %1368 = vmatprep.subr.bf16.mxu0 %v1067
    %1369 = vmatpush2.bf16.msra.mxu0 %v1066
    %1370 = vmatprep.subr.bf16.mxu0 %v1064
    %1371 = vmatpush2.bf16.msra.mxu0 %v1063
    %1372 = vmatprep.subr.bf16.mxu0 %v1061
    %1373 = vmatpush2.bf16.msra.mxu0 %v1060
    %1374 = vmatprep.subr.bf16.mxu0 %v1058
    %1375 = vmatpush2.bf16.msra.mxu0 %v1057
    %1376 = vmatprep.subr.bf16.mxu0 %v1055
    %1377 = vmatpush2.bf16.msra.mxu0 %v1054
    %1378 = vmatprep.subr.bf16.mxu0 %v1052
    %1379 = vmatpush2.bf16.msra.mxu0 %v1051
    %1380 = vmatprep.subr.bf16.mxu0 %v1049
    %1381 = vmatpush2.bf16.msra.mxu0 %v1048
    %1382 = vmatprep.mubr.bf16.mxu0 %v359
    %1383 = vmatmul.mubr.bf16.gmra.mxu0 %v358
    %v1384 = vpop.f32.mrf.mxu0
    %v1385 = vadd.f32 %v1342, %v1384
    %v1386 = vpop.f32.mrf.mxu0
    %v1387 = vadd.f32 %v1344, %v1386
    %v1388 = vpop.f32.mrf.mxu0
    %v1389 = vadd.f32 %v1346, %v1388
    %v1390 = vpop.f32.mrf.mxu0
    %v1391 = vadd.f32 %v1348, %v1390
    %1392 = vdwg.mxu0
    %1393 = vmatprep.subr.bf16.mxu0 %v1094
    %1394 = vmatpush1.bf16.msra.mxu0 %v1093
    %1395 = vmatprep.subr.bf16.mxu0 %v1091
    %1396 = vmatpush1.bf16.msra.mxu0 %v1090
    %1397 = vmatprep.subr.bf16.mxu0 %v1088
    %1398 = vmatpush1.bf16.msra.mxu0 %v1087
    %1399 = vmatprep.subr.bf16.mxu0 %v1085
    %1400 = vmatpush1.bf16.msra.mxu0 %v1084
    %1401 = vmatprep.subr.bf16.mxu0 %v1082
    %1402 = vmatpush1.bf16.msra.mxu0 %v1081
    %1403 = vmatprep.subr.bf16.mxu0 %v1079
    %1404 = vmatpush1.bf16.msra.mxu0 %v1078
    %1405 = vmatprep.subr.bf16.mxu0 %v1076
    %1406 = vmatpush1.bf16.msra.mxu0 %v1075
    %1407 = vmatprep.subr.bf16.mxu0 %v1073
    %1408 = vmatpush1.bf16.msra.mxu0 %v1072
    %1409 = vmatprep.subr.bf16.mxu0 0
    %1410 = vmatpush2.bf16.msra.mxu0 0
    %1411 = vmatprep.subr.bf16.mxu0 0
    %1412 = vmatpush2.bf16.msra.mxu0 0
    %1413 = vmatprep.subr.bf16.mxu0 0
    %1414 = vmatpush2.bf16.msra.mxu0 0
    %1415 = vmatprep.subr.bf16.mxu0 0
    %1416 = vmatpush2.bf16.msra.mxu0 0
    %1417 = vmatprep.subr.bf16.mxu0 0
    %1418 = vmatpush2.bf16.msra.mxu0 0
    %1419 = vmatprep.subr.bf16.mxu0 0
    %1420 = vmatpush2.bf16.msra.mxu0 0
    %1421 = vmatprep.subr.bf16.mxu0 0
    %1422 = vmatpush2.bf16.msra.mxu0 0
    %1423 = vmatprep.subr.bf16.mxu0 0
    %1424 = vmatpush2.bf16.msra.mxu0 0
    %1425 = vmatprep.mubr.bf16.mxu0 0
    %1426 = vmatmul.mubr.bf16.gmra.mxu0 %v360
    %v1427 = vpop.f32.mrf.mxu0
    %v1428 = vadd.f32 %v1385, %v1427
    %v1429 = vpop.f32.mrf.mxu0
    %v1430 = vadd.f32 %v1387, %v1429
    %v1431 = vpop.f32.mrf.mxu0
    %v1432 = vadd.f32 %v1389, %v1431
    %v1433 = vpop.f32.mrf.mxu0
    %v1434 = vadd.f32 %v1391, %v1433
    %1435 = vdwg.mxu0
    %1436 = vmatprep.subr.bf16.mxu0 0
    %1437 = vmatpush1.bf16.msra.mxu0 %v951
    %1438 = vmatprep.subr.bf16.mxu0 0
    %1439 = vmatpush1.bf16.msra.mxu0 %v948
    %1440 = vmatprep.subr.bf16.mxu0 0
    %1441 = vmatpush1.bf16.msra.mxu0 %v945
    %1442 = vmatprep.subr.bf16.mxu0 0
    %1443 = vmatpush1.bf16.msra.mxu0 %v942
    %1444 = vmatprep.subr.bf16.mxu0 0
    %1445 = vmatpush1.bf16.msra.mxu0 %v939
    %1446 = vmatprep.subr.bf16.mxu0 0
    %1447 = vmatpush1.bf16.msra.mxu0 %v936
    %1448 = vmatprep.subr.bf16.mxu0 0
    %1449 = vmatpush1.bf16.msra.mxu0 %v933
    %1450 = vmatprep.subr.bf16.mxu0 0
    %1451 = vmatpush1.bf16.msra.mxu0 %v930
    %1452 = vmatprep.subr.bf16.mxu0 0
    %1453 = vmatpush2.bf16.msra.mxu0 %v975
    %1454 = vmatprep.subr.bf16.mxu0 0
    %1455 = vmatpush2.bf16.msra.mxu0 %v972
    %1456 = vmatprep.subr.bf16.mxu0 0
    %1457 = vmatpush2.bf16.msra.mxu0 %v969
    %1458 = vmatprep.subr.bf16.mxu0 0
    %1459 = vmatpush2.bf16.msra.mxu0 %v966
    %1460 = vmatprep.subr.bf16.mxu0 0
    %1461 = vmatpush2.bf16.msra.mxu0 %v963
    %1462 = vmatprep.subr.bf16.mxu0 0
    %1463 = vmatpush2.bf16.msra.mxu0 %v960
    %1464 = vmatprep.subr.bf16.mxu0 0
    %1465 = vmatpush2.bf16.msra.mxu0 %v957
    %1466 = vmatprep.subr.bf16.mxu0 0
    %1467 = vmatpush2.bf16.msra.mxu0 %v954
    %1468 = vmatprep.mubr.bf16.mxu0 %v355
    %1469 = vmatmul.mubr.bf16.gmra.mxu0 %v354
    %v1470 = vpop.f32.mrf.mxu0
    %v1471 = vadd.f32 %v328, %v1470
    %v1472 = vpop.f32.mrf.mxu0
    %v1473 = vpop.f32.mrf.mxu0
    %v1474 = vadd.f32 %v328, %v1473
    %v1475 = vpop.f32.mrf.mxu0
    %1476 = vdwg.mxu0
    %1477 = vmatprep.subr.bf16.mxu0 0
    %1478 = vmatpush1.bf16.msra.mxu0 %v999
    %1479 = vmatprep.subr.bf16.mxu0 0
    %1480 = vmatpush1.bf16.msra.mxu0 %v996
    %1481 = vmatprep.subr.bf16.mxu0 0
    %1482 = vmatpush1.bf16.msra.mxu0 %v993
    %1483 = vmatprep.subr.bf16.mxu0 0
    %1484 = vmatpush1.bf16.msra.mxu0 %v990
    %1485 = vmatprep.subr.bf16.mxu0 0
    %1486 = vmatpush1.bf16.msra.mxu0 %v987
    %1487 = vmatprep.subr.bf16.mxu0 0
    %1488 = vmatpush1.bf16.msra.mxu0 %v984
    %1489 = vmatprep.subr.bf16.mxu0 0
    %1490 = vmatpush1.bf16.msra.mxu0 %v981
    %1491 = vmatprep.subr.bf16.mxu0 0
    %1492 = vmatpush1.bf16.msra.mxu0 %v978
    %1493 = vmatprep.subr.bf16.mxu0 0
    %1494 = vmatpush2.bf16.msra.mxu0 %v1023
    %1495 = vmatprep.subr.bf16.mxu0 0
    %1496 = vmatpush2.bf16.msra.mxu0 %v1020
    %1497 = vmatprep.subr.bf16.mxu0 0
    %1498 = vmatpush2.bf16.msra.mxu0 %v1017
    %1499 = vmatprep.subr.bf16.mxu0 0
    %1500 = vmatpush2.bf16.msra.mxu0 %v1014
    %1501 = vmatprep.subr.bf16.mxu0 0
    %1502 = vmatpush2.bf16.msra.mxu0 %v1011
    %1503 = vmatprep.subr.bf16.mxu0 0
    %1504 = vmatpush2.bf16.msra.mxu0 %v1008
    %1505 = vmatprep.subr.bf16.mxu0 0
    %1506 = vmatpush2.bf16.msra.mxu0 %v1005
    %1507 = vmatprep.subr.bf16.mxu0 0
    %1508 = vmatpush2.bf16.msra.mxu0 %v1002
    %1509 = vmatprep.mubr.bf16.mxu0 %v357
    %1510 = vmatmul.mubr.bf16.gmra.mxu0 %v356
    %v1511 = vpop.f32.mrf.mxu0
    %v1512 = vadd.f32 %v1471, %v1511
    %v1513 = vpop.f32.mrf.mxu0
    %v1514 = vpop.f32.mrf.mxu0
    %v1515 = vadd.f32 %v1474, %v1514
    %v1516 = vpop.f32.mrf.mxu0
    %1517 = vdwg.mxu0
    %1518 = vmatprep.subr.bf16.mxu0 0
    %1519 = vmatpush1.bf16.msra.mxu0 %v1047
    %1520 = vmatprep.subr.bf16.mxu0 0
    %1521 = vmatpush1.bf16.msra.mxu0 %v1044
    %1522 = vmatprep.subr.bf16.mxu0 0
    %1523 = vmatpush1.bf16.msra.mxu0 %v1041
    %1524 = vmatprep.subr.bf16.mxu0 0
    %1525 = vmatpush1.bf16.msra.mxu0 %v1038
    %1526 = vmatprep.subr.bf16.mxu0 0
    %1527 = vmatpush1.bf16.msra.mxu0 %v1035
    %1528 = vmatprep.subr.bf16.mxu0 0
    %1529 = vmatpush1.bf16.msra.mxu0 %v1032
    %1530 = vmatprep.subr.bf16.mxu0 0
    %1531 = vmatpush1.bf16.msra.mxu0 %v1029
    %1532 = vmatprep.subr.bf16.mxu0 0
    %1533 = vmatpush1.bf16.msra.mxu0 %v1026
    %1534 = vmatprep.subr.bf16.mxu0 0
    %1535 = vmatpush2.bf16.msra.mxu0 %v1071
    %1536 = vmatprep.subr.bf16.mxu0 0
    %1537 = vmatpush2.bf16.msra.mxu0 %v1068
    %1538 = vmatprep.subr.bf16.mxu0 0
    %1539 = vmatpush2.bf16.msra.mxu0 %v1065
    %1540 = vmatprep.subr.bf16.mxu0 0
    %1541 = vmatpush2.bf16.msra.mxu0 %v1062
    %1542 = vmatprep.subr.bf16.mxu0 0
    %1543 = vmatpush2.bf16.msra.mxu0 %v1059
    %1544 = vmatprep.subr.bf16.mxu0 0
    %1545 = vmatpush2.bf16.msra.mxu0 %v1056
    %1546 = vmatprep.subr.bf16.mxu0 0
    %1547 = vmatpush2.bf16.msra.mxu0 %v1053
    %1548 = vmatprep.subr.bf16.mxu0 0
    %1549 = vmatpush2.bf16.msra.mxu0 %v1050
    %1550 = vmatprep.mubr.bf16.mxu0 %v359
    %1551 = vmatmul.mubr.bf16.gmra.mxu0 %v358
    %v1552 = vpop.f32.mrf.mxu0
    %v1553 = vadd.f32 %v1512, %v1552
    %v1554 = vpop.f32.mrf.mxu0
    %v1555 = vpop.f32.mrf.mxu0
    %v1556 = vadd.f32 %v1515, %v1555
    %v1557 = vpop.f32.mrf.mxu0
    %1558 = vdwg.mxu0
    %1559 = vmatprep.subr.bf16.mxu0 0
    %1560 = vmatpush1.bf16.msra.mxu0 %v1095
    %1561 = vmatprep.subr.bf16.mxu0 0
    %1562 = vmatpush1.bf16.msra.mxu0 %v1092
    %1563 = vmatprep.subr.bf16.mxu0 0
    %1564 = vmatpush1.bf16.msra.mxu0 %v1089
    %1565 = vmatprep.subr.bf16.mxu0 0
    %1566 = vmatpush1.bf16.msra.mxu0 %v1086
    %1567 = vmatprep.subr.bf16.mxu0 0
    %1568 = vmatpush1.bf16.msra.mxu0 %v1083
    %1569 = vmatprep.subr.bf16.mxu0 0
    %1570 = vmatpush1.bf16.msra.mxu0 %v1080
    %1571 = vmatprep.subr.bf16.mxu0 0
    %1572 = vmatpush1.bf16.msra.mxu0 %v1077
    %1573 = vmatprep.subr.bf16.mxu0 0
    %1574 = vmatpush1.bf16.msra.mxu0 %v1074
    %1575 = vmatprep.subr.bf16.mxu0 0
    %1576 = vmatpush2.bf16.msra.mxu0 0
    %1577 = vmatprep.subr.bf16.mxu0 0
    %1578 = vmatpush2.bf16.msra.mxu0 0
    %1579 = vmatprep.subr.bf16.mxu0 0
    %1580 = vmatpush2.bf16.msra.mxu0 0
    %1581 = vmatprep.subr.bf16.mxu0 0
    %1582 = vmatpush2.bf16.msra.mxu0 0
    %1583 = vmatprep.subr.bf16.mxu0 0
    %1584 = vmatpush2.bf16.msra.mxu0 0
    %1585 = vmatprep.subr.bf16.mxu0 0
    %1586 = vmatpush2.bf16.msra.mxu0 0
    %1587 = vmatprep.subr.bf16.mxu0 0
    %1588 = vmatpush2.bf16.msra.mxu0 0
    %1589 = vmatprep.subr.bf16.mxu0 0
    %1590 = vmatpush2.bf16.msra.mxu0 0
    %1591 = vmatprep.mubr.bf16.mxu0 0
    %1592 = vmatmul.mubr.bf16.gmra.mxu0 %v360
    %v1593 = vpop.f32.mrf.mxu0
    %v1594 = vadd.f32 %v1553, %v1593
    %v1595 = vpop.f32.mrf.mxu0
    %v1596 = vpop.f32.mrf.mxu0
    %v1597 = vadd.f32 %v1556, %v1596
    %v1598 = vpop.f32.mrf.mxu0
    %1599 = vdwg.mxu0
    %v1600 = vmax.f32 %v1428, 0.0
    %v1601 = vmax.f32 %v1430, 0.0
    %v1602 = vmax.f32 %v1594, 0.0
    %v1603 = vmax.f32 %v1432, 0.0
    %v1604 = vmax.f32 %v1434, 0.0
    %v1605 = vmax.f32 %v1597, 0.0
    %v1606 = vpack.c.bf16 %v1603, %v1600
    %v1607 = vpack.c.bf16 %v1604, %v1601
    %v1608 = vpack.c.bf16 %v1605, %v1602
    %v1609 = vld [vmem:[#allocation7] sm:$0xf]
    %v1610 = vld [vmem:[#allocation7 + $0x4] sm:$0xf]
    %v1611 = vld [vmem:[#allocation7 + $0x8] sm:$0xf]
    %v1612 = vld [vmem:[#allocation7 + $0xc] sm:$0xf]
    %v1613 = vld [vmem:[#allocation7 + $0x10] sm:$0xf]
    %v1614 = vld [vmem:[#allocation7 + $0x14] sm:$0xf]
    %v1615 = vld [vmem:[#allocation7 + $0x18] sm:$0xf]
    %v1616 = vld [vmem:[#allocation7 + $0x1c] sm:$0xf]
    %v1617 = vld [vmem:[#allocation7 + $0x20] sm:$0xf]
    %v1618 = vld [vmem:[#allocation7 + $0x24] sm:$0xf]
    %v1619 = vld [vmem:[#allocation7 + $0x28] sm:$0xf]
    %v1620 = vld [vmem:[#allocation7 + $0x2c] sm:$0xf]
    %v1621 = vld [vmem:[#allocation7 + $0x30] sm:$0xf]
    %v1622 = vld [vmem:[#allocation7 + $0x34] sm:$0xf]
    %v1623 = vld [vmem:[#allocation7 + $0x38] sm:$0xf]
    %v1624 = vld [vmem:[#allocation7 + $0x3c] sm:$0xf]
    %v1625 = vld [vmem:[#allocation7 + $0x40] sm:$0xf]
    %v1626 = vld [vmem:[#allocation7 + $0x44] sm:$0xf]
    %v1627 = vld [vmem:[#allocation7 + $0x48] sm:$0xf]
    %v1628 = vld [vmem:[#allocation7 + $0x4c] sm:$0xf]
    %v1629 = vld [vmem:[#allocation7 + $0x50] sm:$0xf]
    %v1630 = vld [vmem:[#allocation7 + $0x54] sm:$0xf]
    %v1631 = vld [vmem:[#allocation7 + $0x58] sm:$0xf]
    %v1632 = vld [vmem:[#allocation7 + $0x5c] sm:$0xf]
    %v1633 = vld [vmem:[#allocation7 + $0x60] sm:$0xf]
    %v1634 = vld [vmem:[#allocation7 + $0x64] sm:$0xf]
    %v1635 = vld [vmem:[#allocation7 + $0x68] sm:$0xf]
    %v1636 = vld [vmem:[#allocation7 + $0x6c] sm:$0xf]
    %v1637 = vld [vmem:[#allocation7 + $0x70] sm:$0xf]
    %v1638 = vld [vmem:[#allocation7 + $0x74] sm:$0xf]
    %v1639 = vld [vmem:[#allocation7 + $0x78] sm:$0xf]
    %v1640 = vld [vmem:[#allocation7 + $0x7c] sm:$0xf]
    %v1641 = vld [vmem:[#allocation7 + $0x80] sm:$0xf]
    %v1642 = vld [vmem:[#allocation7 + $0x84] sm:$0xf]
    %v1643 = vld [vmem:[#allocation7 + $0x88] sm:$0xf]
    %v1644 = vld [vmem:[#allocation7 + $0x8c] sm:$0xf]
    %v1645 = vld [vmem:[#allocation7 + $0x90] sm:$0xf]
    %v1646 = vld [vmem:[#allocation7 + $0x94] sm:$0xf]
    %v1647 = vld [vmem:[#allocation7 + $0x98] sm:$0xf]
    %v1648 = vld [vmem:[#allocation7 + $0x9c] sm:$0xf]
    %v1649 = vld [vmem:[#allocation7 + $0xa0] sm:$0xf]
    %v1650 = vld [vmem:[#allocation7 + $0xa4] sm:$0xf]
    %v1651 = vld [vmem:[#allocation7 + $0xa8] sm:$0xf]
    %v1652 = vld [vmem:[#allocation7 + $0xac] sm:$0xf]
    %v1653 = vld [vmem:[#allocation7 + $0xb0] sm:$0xf]
    %v1654 = vld [vmem:[#allocation7 + $0xb4] sm:$0xf]
    %v1655 = vld [vmem:[#allocation7 + $0xb8] sm:$0xf]
    %v1656 = vld [vmem:[#allocation7 + $0xbc] sm:$0xf]
    %v1657 = vld [vmem:[%s4] sm:$0x1]
    %v1659 = vlaneseq
    %v1660 = vshrl.u32 %v1659, 7
    %v1661 = vsub.s32 0, %v1660
    %v1662 = vrot.slane %v1657, %v1661
    %v1712 = vunpack.c.l.b16 %v1609
    %v1713 = vunpack.c.l.b16 %v1610
    %v1714 = vunpack.c.l.b16 %v1611
    %v1715 = vunpack.c.l.b16 %v1612
    %v1716 = vunpack.c.l.b16 %v1613
    %v1717 = vunpack.c.l.b16 %v1614
    %v1718 = vunpack.c.l.b16 %v1615
    %v1719 = vunpack.c.l.b16 %v1616
    %v1720 = vunpack.c.l.b16 %v1617
    %v1721 = vunpack.c.l.b16 %v1618
    %v1722 = vunpack.c.l.b16 %v1619
    %v1723 = vunpack.c.l.b16 %v1620
    %v1724 = vunpack.c.l.b16 %v1621
    %v1725 = vunpack.c.l.b16 %v1622
    %v1726 = vunpack.c.l.b16 %v1623
    %v1727 = vunpack.c.l.b16 %v1624
    %v1728 = vunpack.c.l.b16 %v1625
    %v1729 = vunpack.c.l.b16 %v1626
    %v1730 = vunpack.c.l.b16 %v1627
    %v1731 = vunpack.c.l.b16 %v1628
    %v1732 = vunpack.c.l.b16 %v1629
    %v1733 = vunpack.c.l.b16 %v1630
    %v1734 = vunpack.c.l.b16 %v1631
    %v1735 = vunpack.c.l.b16 %v1632
    %v1736 = vunpack.c.l.b16 %v1633
    %v1737 = vunpack.c.l.b16 %v1634
    %v1738 = vunpack.c.l.b16 %v1635
    %v1739 = vunpack.c.l.b16 %v1636
    %v1740 = vunpack.c.l.b16 %v1637
    %v1741 = vunpack.c.l.b16 %v1638
    %v1742 = vunpack.c.l.b16 %v1639
    %v1743 = vunpack.c.l.b16 %v1640
    %v1744 = vunpack.c.l.b16 %v1641
    %v1745 = vunpack.c.l.b16 %v1642
    %v1746 = vunpack.c.l.b16 %v1643
    %v1747 = vunpack.c.l.b16 %v1644
    %v1748 = vunpack.c.l.b16 %v1645
    %v1749 = vunpack.c.l.b16 %v1646
    %v1750 = vunpack.c.l.b16 %v1647
    %v1751 = vunpack.c.l.b16 %v1648
    %v1752 = vunpack.c.l.b16 %v1649
    %v1753 = vunpack.c.l.b16 %v1650
    %v1754 = vunpack.c.l.b16 %v1651
    %v1755 = vunpack.c.l.b16 %v1652
    %v1756 = vunpack.c.l.b16 %v1653
    %v1757 = vunpack.c.l.b16 %v1654
    %v1758 = vunpack.c.l.b16 %v1655
    %v1759 = vunpack.c.l.b16 %v1656
    %v1760 = vpack.c.b16 %v1713, %v1712
    %v1761 = vpack.c.b16 %v1715, %v1714
    %v1762 = vpack.c.b16 %v1717, %v1716
    %v1763 = vpack.c.b16 %v1719, %v1718
    %v1764 = vpack.c.b16 %v1721, %v1720
    %v1765 = vpack.c.b16 %v1723, %v1722
    %v1766 = vpack.c.b16 %v1725, %v1724
    %v1767 = vpack.c.b16 %v1727, %v1726
    %v1768 = vpack.c.b16 %v1729, %v1728
    %v1769 = vpack.c.b16 %v1731, %v1730
    %v1770 = vpack.c.b16 %v1733, %v1732
    %v1771 = vpack.c.b16 %v1735, %v1734
    %v1772 = vpack.c.b16 %v1737, %v1736
    %v1773 = vpack.c.b16 %v1739, %v1738
    %v1774 = vpack.c.b16 %v1741, %v1740
    %v1775 = vpack.c.b16 %v1743, %v1742
    %v1776 = vpack.c.b16 %v1745, %v1744
    %v1777 = vpack.c.b16 %v1747, %v1746
    %v1778 = vpack.c.b16 %v1749, %v1748
    %v1779 = vpack.c.b16 %v1751, %v1750
    %v1780 = vpack.c.b16 %v1753, %v1752
    %v1781 = vpack.c.b16 %v1755, %v1754
    %v1782 = vpack.c.b16 %v1757, %v1756
    %v1783 = vpack.c.b16 %v1759, %v1758
    %1808 = vmatprep.subr.bf16.mxu0 0
    %1809 = vmatpush1.bf16.msra.mxu0 %v1767
    %1810 = vmatprep.subr.bf16.mxu0 0
    %1811 = vmatpush1.bf16.msra.mxu0 %v1766
    %1812 = vmatprep.subr.bf16.mxu0 0
    %1813 = vmatpush1.bf16.msra.mxu0 %v1765
    %1814 = vmatprep.subr.bf16.mxu0 0
    %1815 = vmatpush1.bf16.msra.mxu0 %v1764
    %1816 = vmatprep.subr.bf16.mxu0 0
    %1817 = vmatpush1.bf16.msra.mxu0 %v1763
    %1818 = vmatprep.subr.bf16.mxu0 0
    %1819 = vmatpush1.bf16.msra.mxu0 %v1762
    %1820 = vmatprep.subr.bf16.mxu0 0
    %1821 = vmatpush1.bf16.msra.mxu0 %v1761
    %1822 = vmatprep.subr.bf16.mxu0 0
    %1823 = vmatpush1.bf16.msra.mxu0 %v1760
    %1824 = vmatprep.subr.bf16.mxu0 0
    %1825 = vmatpush2.bf16.msra.mxu0 %v1775
    %1826 = vmatprep.subr.bf16.mxu0 0
    %1827 = vmatpush2.bf16.msra.mxu0 %v1774
    %1828 = vmatprep.subr.bf16.mxu0 0
    %1829 = vmatpush2.bf16.msra.mxu0 %v1773
    %1830 = vmatprep.subr.bf16.mxu0 0
    %1831 = vmatpush2.bf16.msra.mxu0 %v1772
    %1832 = vmatprep.subr.bf16.mxu0 0
    %1833 = vmatpush2.bf16.msra.mxu0 %v1771
    %1834 = vmatprep.subr.bf16.mxu0 0
    %1835 = vmatpush2.bf16.msra.mxu0 %v1770
    %1836 = vmatprep.subr.bf16.mxu0 0
    %1837 = vmatpush2.bf16.msra.mxu0 %v1769
    %1838 = vmatprep.subr.bf16.mxu0 0
    %1839 = vmatpush2.bf16.msra.mxu0 %v1768
    %1840 = vmatprep.mubr.bf16.mxu0 %v1607
    %1841 = vmatmul.mubr.bf16.gmra.mxu0 %v1606
    %v1842 = vpop.f32.mrf.mxu0
    %v1843 = vadd.f32 %v1662, %v1842
    %v1844 = vpop.f32.mrf.mxu0
    %v1845 = vpop.f32.mrf.mxu0
    %v1846 = vadd.f32 %v1662, %v1845
    %v1847 = vpop.f32.mrf.mxu0
    %1848 = vdwg.mxu0
    %1849 = vmatprep.subr.bf16.mxu0 0
    %1850 = vmatpush1.bf16.msra.mxu0 %v1783
    %1851 = vmatprep.subr.bf16.mxu0 0
    %1852 = vmatpush1.bf16.msra.mxu0 %v1782
    %1853 = vmatprep.subr.bf16.mxu0 0
    %1854 = vmatpush1.bf16.msra.mxu0 %v1781
    %1855 = vmatprep.subr.bf16.mxu0 0
    %1856 = vmatpush1.bf16.msra.mxu0 %v1780
    %1857 = vmatprep.subr.bf16.mxu0 0
    %1858 = vmatpush1.bf16.msra.mxu0 %v1779
    %1859 = vmatprep.subr.bf16.mxu0 0
    %1860 = vmatpush1.bf16.msra.mxu0 %v1778
    %1861 = vmatprep.subr.bf16.mxu0 0
    %1862 = vmatpush1.bf16.msra.mxu0 %v1777
    %1863 = vmatprep.subr.bf16.mxu0 0
    %1864 = vmatpush1.bf16.msra.mxu0 %v1776
    %1865 = vmatprep.subr.bf16.mxu0 0
    %1866 = vmatpush2.bf16.msra.mxu0 0
    %1867 = vmatprep.subr.bf16.mxu0 0
    %1868 = vmatpush2.bf16.msra.mxu0 0
    %1869 = vmatprep.subr.bf16.mxu0 0
    %1870 = vmatpush2.bf16.msra.mxu0 0
    %1871 = vmatprep.subr.bf16.mxu0 0
    %1872 = vmatpush2.bf16.msra.mxu0 0
    %1873 = vmatprep.subr.bf16.mxu0 0
    %1874 = vmatpush2.bf16.msra.mxu0 0
    %1875 = vmatprep.subr.bf16.mxu0 0
    %1876 = vmatpush2.bf16.msra.mxu0 0
    %1877 = vmatprep.subr.bf16.mxu0 0
    %1878 = vmatpush2.bf16.msra.mxu0 0
    %1879 = vmatprep.subr.bf16.mxu0 0
    %1880 = vmatpush2.bf16.msra.mxu0 0
    %1881 = vmatprep.mubr.bf16.mxu0 0
    %1882 = vmatmul.mubr.bf16.gmra.mxu0 %v1608
    %v1883 = vpop.f32.mrf.mxu0
    %v1884 = vadd.f32 %v1843, %v1883
    %v1885 = vpop.f32.mrf.mxu0
    %v1886 = vpop.f32.mrf.mxu0
    %v1887 = vadd.f32 %v1846, %v1886
    %v1888 = vpop.f32.mrf.mxu0
    %1889 = vdwg.mxu0
    %v1890 = vmax.f32 %v1884, 0.0
    %v1891 = vmax.f32 %v1887, 0.0
    %v1892 = vpack.c.bf16 %v1891, %v1890
    %v1893 = vld [vmem:[#allocation8] sm:$0xf]
    %v1894 = vld [vmem:[#allocation8 + $0x4] sm:$0xf]
    %v1895 = vld [vmem:[#allocation8 + $0x8] sm:$0xf]
    %v1896 = vld [vmem:[#allocation8 + $0xc] sm:$0xf]
    %v1897 = vld [vmem:[#allocation8 + $0x10] sm:$0xf]
    %v1898 = vld [vmem:[#allocation8 + $0x14] sm:$0xf]
    %v1899 = vld [vmem:[#allocation8 + $0x18] sm:$0xf]
    %v1900 = vld [vmem:[#allocation8 + $0x1c] sm:$0xf]
    %v1901 = vld [vmem:[#allocation8 + $0x20] sm:$0xf]
    %v1902 = vld [vmem:[#allocation8 + $0x24] sm:$0xf]
    %v1903 = vld [vmem:[#allocation8 + $0x28] sm:$0xf]
    %v1904 = vld [vmem:[#allocation8 + $0x2c] sm:$0xf]
    %v1905 = vld [vmem:[#allocation8 + $0x30] sm:$0xf]
    %v1906 = vld [vmem:[#allocation8 + $0x34] sm:$0xf]
    %v1907 = vld [vmem:[#allocation8 + $0x38] sm:$0xf]
    %v1908 = vld [vmem:[#allocation8 + $0x3c] sm:$0xf]
    %v1909 = vld [vmem:[%s6] sm:$0x1]
    %v1911 = vlaneseq
    %v1912 = vshrl.u32 %v1911, 7
    %v1913 = vsub.s32 0, %v1912
    %v1914 = vrot.slane %v1909, %v1913
    %v1932 = vunpack.c.l.b16 %v1893
    %v1933 = vunpack.c.l.b16 %v1894
    %v1934 = vunpack.c.l.b16 %v1895
    %v1935 = vunpack.c.l.b16 %v1896
    %v1936 = vunpack.c.l.b16 %v1897
    %v1937 = vunpack.c.l.b16 %v1898
    %v1938 = vunpack.c.l.b16 %v1899
    %v1939 = vunpack.c.l.b16 %v1900
    %v1940 = vunpack.c.l.b16 %v1901
    %v1941 = vunpack.c.l.b16 %v1902
    %v1942 = vunpack.c.l.b16 %v1903
    %v1943 = vunpack.c.l.b16 %v1904
    %v1944 = vunpack.c.l.b16 %v1905
    %v1945 = vunpack.c.l.b16 %v1906
    %v1946 = vunpack.c.l.b16 %v1907
    %v1947 = vunpack.c.l.b16 %v1908
    %v1948 = vpack.c.b16 %v1933, %v1932
    %v1949 = vpack.c.b16 %v1935, %v1934
    %v1950 = vpack.c.b16 %v1937, %v1936
    %v1951 = vpack.c.b16 %v1939, %v1938
    %v1952 = vpack.c.b16 %v1941, %v1940
    %v1953 = vpack.c.b16 %v1943, %v1942
    %v1954 = vpack.c.b16 %v1945, %v1944
    %v1955 = vpack.c.b16 %v1947, %v1946
    %1964 = vmatprep.subr.bf16.mxu0 0
    %1965 = vmatpush1.bf16.msra.mxu0 %v1955
    %1966 = vmatprep.subr.bf16.mxu0 0
    %1967 = vmatpush1.bf16.msra.mxu0 %v1954
    %1968 = vmatprep.subr.bf16.mxu0 0
    %1969 = vmatpush1.bf16.msra.mxu0 %v1953
    %1970 = vmatprep.subr.bf16.mxu0 0
    %1971 = vmatpush1.bf16.msra.mxu0 %v1952
    %1972 = vmatprep.subr.bf16.mxu0 0
    %1973 = vmatpush1.bf16.msra.mxu0 %v1951
    %1974 = vmatprep.subr.bf16.mxu0 0
    %1975 = vmatpush1.bf16.msra.mxu0 %v1950
    %1976 = vmatprep.subr.bf16.mxu0 0
    %1977 = vmatpush1.bf16.msra.mxu0 %v1949
    %1978 = vmatprep.subr.bf16.mxu0 0
    %1979 = vmatpush1.bf16.msra.mxu0 %v1948
    %1980 = vmatprep.subr.bf16.mxu0 0
    %1981 = vmatpush2.bf16.msra.mxu0 0
    %1982 = vmatprep.subr.bf16.mxu0 0
    %1983 = vmatpush2.bf16.msra.mxu0 0
    %1984 = vmatprep.subr.bf16.mxu0 0
    %1985 = vmatpush2.bf16.msra.mxu0 0
    %1986 = vmatprep.subr.bf16.mxu0 0
    %1987 = vmatpush2.bf16.msra.mxu0 0
    %1988 = vmatprep.subr.bf16.mxu0 0
    %1989 = vmatpush2.bf16.msra.mxu0 0
    %1990 = vmatprep.subr.bf16.mxu0 0
    %1991 = vmatpush2.bf16.msra.mxu0 0
    %1992 = vmatprep.subr.bf16.mxu0 0
    %1993 = vmatpush2.bf16.msra.mxu0 0
    %1994 = vmatprep.subr.bf16.mxu0 0
    %1995 = vmatpush2.bf16.msra.mxu0 0
    %1996 = vmatprep.mubr.bf16.mxu0 0
    %1997 = vmatmul.mubr.bf16.gmra.mxu0 %v1892
    %v1998 = vpop.f32.mrf.mxu0
    %v1999 = vadd.f32 %v1914, %v1998
    %v2000 = vpop.f32.mrf.mxu0
    %v2001 = vpop.f32.mrf.mxu0
    %v2002 = vadd.f32 %v1914, %v2001
    %v2003 = vpop.f32.mrf.mxu0
    %2004 = vdwg.mxu0
    %2005 = vmax.xlane.f32.xlu0 %v1999
    %v2006 = vpop.xlane.xlu0 %2005
    %2007 = vmax.xlane.f32.xlu0 %v2002
    %v2008 = vpop.xlane.xlu0 %2007
    %v2009 = vsub.f32 %v1999, %v2006
    %v2010 = vsub.f32 %v2002, %v2008
    %v2011 = vmul.f32 %v2009, 1.442695
    %v2012 = vpow.pop %v2011
    %v2013 = vmul.f32 %v2010, 1.442695
    %v2014 = vpow.pop %v2013
    %2015 = vadd.xlane.f32.xlu0 %v2012
    %v2016 = vpop.xlane.xlu0 %2015
    %2017 = vadd.xlane.f32.xlu0 %v2014
    %v2018 = vpop.xlane.xlu0 %2017
    %v2019 = vrcp.pop %v2016
    %v2020 = vrcp.pop %v2018
    %v2021 = vmul.f32 %v2012, %v2019
    %v2022 = vmul.f32 %v2014, %v2020
    %2023 = vst [vmem:[#allocation10] sm:$0xff] %v2021
    %2024 = vst [vmem:[#allocation10 + $0x8] sm:$0xff] %v2022
    // Predicated region
    $region46: #{tpu_custom_call.1} parent=1 // pred_check
      _
    $region47: #{tpu_custom_call.1} parent=1 // pred_check_branch
      %2026 = sbr.rel (0) target = $region49
    $region48: #{tpu_custom_call.1} parent=1 // pred_region
      %s2028 = ssub.s32 256, 256
      %2029 = vsyncadd [#allocation4], %s2028
      %s2030 = sshll.u32 [#allocation10], 4
      %s2031 = int_to_ptr.vmem [resolvable:$true] %s2030
      %2036 = dma.vmem_to_hbm [thread:$0]  %s2031, 256, %s7, [#allocation4], 128, 128, 8
    $region49: #{tpu_custom_call.1} parent=1 // pred_fallthru
      _
    // Predicated region
    $region50: #{tpu_custom_call.1} parent=1 // pred_check
      _
    $region51: #{tpu_custom_call.1} parent=1 // pred_check_branch
      %2038 = sbr.rel (0) target = $region53
    $region52: #{tpu_custom_call.1} parent=1 // pred_region
      %2039 = dma.done [#allocation4], 256
    $region53: #{tpu_custom_call.1} parent=1 // pred_fallthru
      _
    %2040 = vsyncpa [#allocation3], 1
    %2041 = vsyncpa [#allocation6], 1
    %2042 = vsyncpa [#allocation9], 1
    %2043 = vsyncpa [#allocation4], 1

</llo_original>
